<compile_context>
chip_gen: v6e
topology: v6e:2x2x1
jax: 0.10.0
libtpu: 0.0.40
codegen_flags: <defaults>
</compile_context>

<pallas_src>
import jax
import jax.numpy as jnp
from jax.experimental import pallas as pl
from jax.experimental.pallas import tpu as pltpu

EPS = 1e-5


def residual_kernel(x_ref, gamma_ref, beta_ref, w_ref, b_ref, o_ref, h_ref):
    """Emit one (tm, tn) output tile of  out = x + Linear(LayerNorm(x)).

    x_ref:     (tm, D)  token rows (full feature dim needed for LayerNorm stats)
    gamma_ref: (1, D)   LayerNorm scale
    beta_ref:  (1, D)   LayerNorm shift
    w_ref:     (D, tn)  bf16 column slice of W.T (pre-transposed / pre-cast once)
    b_ref:     (1, tn)  bias column slice
    o_ref:     (tm, tn) output tile
    h_ref:     (tm, D)  persistent bf16 scratch holding LayerNorm(x) for this token tile
    """
    j = pl.program_id(1)
    D = x_ref.shape[-1]
    tn = o_ref.shape[-1]

    # ---- LayerNorm once per token tile (f32 math; v5e has no bf16 VPU/EUP). ----
    # One-pass variance (E[x^2] - mean^2) keeps a single tm x D f32 temporary live.
    @pl.when(j == 0)
    def _():
        xf = x_ref[...].astype(jnp.float32)
        mean = jnp.mean(xf, axis=-1, keepdims=True)
        var = jnp.mean(xf * xf, axis=-1, keepdims=True) - mean * mean
        scale = jax.lax.rsqrt(var + EPS)
        h = (xf - mean) * (scale * gamma_ref[...]) + beta_ref[...]
        h_ref[...] = h.astype(jnp.bfloat16)

    # ---- sub_layer: Linear. bf16 operands from the scratch, f32 MXU accumulation. ----
    y = jnp.dot(h_ref[...], w_ref[...], preferred_element_type=jnp.float32)
    y = y + b_ref[...].astype(jnp.float32)

    # ---- dropout(p=0) is identity; residual add for this column slice. ----
    if tn == D:
        x_res = x_ref[...]
    else:
        start = j * tn
        if tn % 128 == 0:
            start = pl.multiple_of(start, 128)
        x_res = x_ref[:, pl.ds(start, tn)]          # only the lanes we need
    o_ref[...] = (y + x_res.astype(jnp.float32)).astype(o_ref.dtype)


def prepare_linear_weight(w):
    """One-time parameter setup (NOT per call): PyTorch Linear stores W as (out, in).
    Pre-transpose to (in, out) and cast to bf16 so the kernel never pays a per-call
    HBM transpose and the weight's HBM/VMEM footprint is halved."""
    return jnp.asarray(w).T.astype(jnp.bfloat16)


def _vmem_capacity_bytes():
    """Physical VMEM of the current generation (128 MiB v5e/v6e, 64 MiB v7x)."""
    try:
        return int(getattr(pltpu.get_tpu_info(), "vmem_capacity_bytes", 128 << 20))
    except Exception:
        return 128 << 20


def residual_connection(x, gamma, beta, wt_bf16, b, *, tm=None, tn=None):
    """x: (B, S, D). gamma/beta/b: (D,). wt_bf16: (D, D) = W.T pre-cast to bf16."""
    B, S, D = x.shape
    N = B * S

    vmem_cap = _vmem_capacity_bytes()

    # Tile selection (generation-aware via physical VMEM capacity):
    #  * tm = 512 token rows clears the weight-streaming roofline on every generation.
    #  * tn = D ("resident weight": block index (0, 0) for the whole grid -> the bf16
    #    weight is read from HBM exactly once) whenever it fits in ~1/4 of VMEM;
    #    otherwise column-tile with a lane-dense tn.
    if tm is None:
        tm = 512
    tm = min(tm, N)
    if tn is None:
        tn = D if (D * D * 2) <= vmem_cap // 4 else min(512, D)
    tn = min(tn, D)

    assert N % tm == 0, "token count must be divisible by the token tile"
    assert D % tn == 0, "d_model must be divisible by the column tile"
    assert tm == N or tm % 8 == 0, "token tile must be a multiple of 8"

    x2 = x.reshape(N, D)
    gamma2 = gamma.reshape(1, D)
    beta2 = beta.reshape(1, D)
    b2 = b.reshape(1, D)

    def build(single_buffer_weight):
        # Per-step VMEM footprint: double-buffered inputs/outputs (unless the weight
        # is explicitly single-buffered), persistent bf16 h scratch, and the live f32
        # LayerNorm temporaries.
        w_bufs = 1 if single_buffer_weight else 2
        vmem_est = (
            2 * tm * D * x.dtype.itemsize        # x tile
            + w_bufs * D * tn * 2                # W.T column slice (bf16)
            + 2 * tm * tn * x.dtype.itemsize     # output tile
            + tm * D * 2                         # persistent h scratch (bf16)
            + 2 * tm * D * 4                     # live f32 LayerNorm temporaries
            + 8 * D * 4                          # gamma / beta / bias
        )
        # Generation-aware cap: up to ~80% of physical VMEM, leaving compiler headroom.
        vmem_limit = int(min(0.8 * vmem_cap, max(32 << 20, 2 * vmem_est)))

        if single_buffer_weight:
            # Constant block index -> a second buffer buys nothing; dropping it is what
            # keeps a resident weight feasible at large d_model.
            w_spec = pl.BlockSpec((D, tn), lambda i, j: (0, j),
                                  pipeline_mode=pl.Buffered(1))
        else:
            w_spec = pl.BlockSpec((D, tn), lambda i, j: (0, j))

        return pl.pallas_call(
            residual_kernel,
            out_shape=jax.ShapeDtypeStruct((N, D), x.dtype),
            grid_spec=pltpu.PrefetchScalarGridSpec(
                num_scalar_prefetch=0,
                grid=(N // tm, D // tn),
                in_specs=[
                    pl.BlockSpec((tm, D), lambda i, j: (i, 0)),   # x rows (full D for LN)
                    pl.BlockSpec((1, D), lambda i, j: (0, 0)),    # gamma
                    pl.BlockSpec((1, D), lambda i, j: (0, 0)),    # beta
                    w_spec,                                       # W.T column slice (bf16)
                    pl.BlockSpec((1, tn), lambda i, j: (0, j)),   # bias column slice
                ],
                out_specs=pl.BlockSpec((tm, tn), lambda i, j: (i, j)),
                scratch_shapes=[pltpu.VMEM((tm, D), jnp.bfloat16)],   # normalized h
            ),
            compiler_params=pltpu.CompilerParams(
                # Token axis shards across TensorCores; the column axis must stay
                # sequential so the h scratch written at j == 0 is valid for j > 0.
                dimension_semantics=("parallel", "arbitrary"),
                vmem_limit_bytes=vmem_limit,
            ),
        )

    if tn == D:
        try:
            out2 = build(True)(x2, gamma2, beta2, wt_bf16, b2)
        except Exception:
            # pipeline_mode=pl.Buffered(1) not supported on this jax build -> default
            # double buffering (correctness unchanged, only costs D*tn*2 bytes of VMEM).
            out2 = build(False)(x2, gamma2, beta2, wt_bf16, b2)
    else:
        out2 = build(False)(x2, gamma2, beta2, wt_bf16, b2)

    return out2.reshape(B, S, D)


def reference(x, gamma, beta, w, b):
    """Pure-JAX reference with the same mixed-precision policy as the kernel
    (f32 LayerNorm, bf16 matmul operands, f32 accumulation, f32 residual)."""
    D = x.shape[-1]
    xf = x.astype(jnp.float32)
    mean = jnp.mean(xf, axis=-1, keepdims=True)
    var = jnp.mean((xf - mean) ** 2, axis=-1, keepdims=True)
    h = (xf - mean) * jax.lax.rsqrt(var + EPS) * gamma + beta
    y = jnp.dot(h.astype(jnp.bfloat16).reshape(-1, D),
                w.T.astype(jnp.bfloat16),
                preferred_element_type=jnp.float32).reshape(x.shape) + b
    return (y + xf).astype(x.dtype)


if __name__ == "__main__":
    key = jax.random.PRNGKey(0)
    B, S, D = 2, 64, 128   # small demo shapes; lane-dense d_model (multiple of 128)

    kx, kw, kb, kg, kbt = jax.random.split(key, 5)
    x = jax.random.normal(kx, (B, S, D), dtype=jnp.float32)

    # Deterministic parameter init (LayerNorm: gamma~1, beta~0; Linear: small weights).
    gamma = 1.0 + 0.01 * jax.random.normal(kg, (D,), dtype=jnp.float32)
    beta = 0.01 * jax.random.normal(kbt, (D,), dtype=jnp.float32)
    w = 0.1 * jax.random.normal(kw, (D, D), dtype=jnp.float32)   # PyTorch (out, in)
    b = 0.1 * jax.random.normal(kb, (D,), dtype=jnp.float32)

    wt_bf16 = prepare_linear_weight(w)   # one-time setup, outside the hot path

    out = residual_connection(x, gamma, beta, wt_bf16, b)
    out = jax.block_until_ready(out)

    ref = reference(x, gamma, beta, w, b)
    assert out.shape == (B, S, D)
    max_err = float(jnp.max(jnp.abs(out - ref)))
    assert jnp.allclose(out, ref, atol=3e-3, rtol=2e-3), f"mismatch vs reference: {max_err}"

    # TODO(synk): dropout with dr>0 would need pltpu.prng_seed/prng_random_bits masking;
    # module default dr=0 makes it the identity here.
    print("KERNEL_OK")
</pallas_src>

<mosaic_0001>
module attributes {stable_mosaic.version = 11 : i64} {
  func.func @residual_kernel(%arg0: i32, %arg1: i32, %arg2: memref<128x128xf32, #tpu.memory_space<vmem>>, %arg3: memref<1x128xf32, #tpu.memory_space<vmem>>, %arg4: memref<1x128xf32, #tpu.memory_space<vmem>>, %arg5: memref<128x128xbf16, #tpu.memory_space<vmem>>, %arg6: memref<1x128xf32, #tpu.memory_space<vmem>>, %arg7: memref<128x128xf32, #tpu.memory_space<vmem>>, %arg8: memref<128x128xbf16, #tpu.memory_space<vmem>>) attributes {dimension_semantics = [#tpu.dimension_semantics<parallel>, #tpu.dimension_semantics<arbitrary>], iteration_bounds = array<i64: 1, 1>, scalar_prefetch = 0 : i64, scratch_operands = 1 : i64, tpu.core_type = #tpu.core_type<tc>, window_params = [{transform_indices = @transform_0, window_bounds = array<i64: 128, 128>}, {pipeline_mode = #tpu.pipeline_mode<synchronous>, transform_indices = @transform_1, window_bounds = array<i64: 1, 128>}, {pipeline_mode = #tpu.pipeline_mode<synchronous>, transform_indices = @transform_2, window_bounds = array<i64: 1, 128>}, {pipeline_mode = #tpu.pipeline_mode<synchronous>, transform_indices = @transform_3, window_bounds = array<i64: 128, 128>}, {transform_indices = @transform_4, window_bounds = array<i64: 1, 128>}, {transform_indices = @transform_5, window_bounds = array<i64: 128, 128>}]} {
    %c0_i32 = arith.constant 0 : i32
    %0 = arith.cmpi eq, %arg1, %c0_i32 : i32
    %1 = arith.extui %0 : i1 to i32
    %c0_i32_0 = arith.constant 0 : i32
    %2 = arith.cmpi ne, %1, %c0_i32_0 : i32
    scf.if %2 {
      %c0_10 = arith.constant 0 : index
      %c0_11 = arith.constant 0 : index
      %12 = vector.load %arg2[%c0_10, %c0_11] : memref<128x128xf32, #tpu.memory_space<vmem>>, vector<128x128xf32>
      %cst_12 = arith.constant dense<0.000000e+00> : vector<128xf32>
      %13 = vector.multi_reduction <add>, %12, %cst_12 [1] : vector<128x128xf32> to vector<128xf32>
      %14 = vector.shape_cast %13 : vector<128xf32> to vector<128x1xf32>
      %cst_13 = arith.constant 1.280000e+02 : f32
      %15 = vector.broadcast %cst_13 : f32 to vector<128x1xf32>
      %16 = arith.divf %14, %15 : vector<128x1xf32>
      %17 = arith.mulf %12, %12 : vector<128x128xf32>
      %cst_14 = arith.constant dense<0.000000e+00> : vector<128xf32>
      %18 = vector.multi_reduction <add>, %17, %cst_14 [1] : vector<128x128xf32> to vector<128xf32>
      %19 = vector.shape_cast %18 : vector<128xf32> to vector<128x1xf32>
      %cst_15 = arith.constant 1.280000e+02 : f32
      %20 = vector.broadcast %cst_15 : f32 to vector<128x1xf32>
      %21 = arith.divf %19, %20 : vector<128x1xf32>
      %22 = arith.mulf %16, %16 : vector<128x1xf32>
      %23 = arith.subf %21, %22 : vector<128x1xf32>
      %cst_16 = arith.constant 9.99999974E-6 : f32
      %24 = vector.broadcast %cst_16 : f32 to vector<128x1xf32>
      %25 = arith.addf %23, %24 : vector<128x1xf32>
      %26 = math.rsqrt %25 : vector<128x1xf32>
      %27 = vector.broadcast %16 : vector<128x1xf32> to vector<128x128xf32>
      %28 = arith.subf %12, %27 : vector<128x128xf32>
      %c0_17 = arith.constant 0 : index
      %c0_18 = arith.constant 0 : index
      %29 = vector.load %arg3[%c0_17, %c0_18] : memref<1x128xf32, #tpu.memory_space<vmem>>, vector<1x128xf32>
      %30 = vector.broadcast %26 : vector<128x1xf32> to vector<128x128xf32>
      %31 = vector.broadcast %29 : vector<1x128xf32> to vector<128x128xf32>
      %32 = arith.mulf %30, %31 : vector<128x128xf32>
      %33 = arith.mulf %28, %32 : vector<128x128xf32>
      %c0_19 = arith.constant 0 : index
      %c0_20 = arith.constant 0 : index
      %34 = vector.load %arg4[%c0_19, %c0_20] : memref<1x128xf32, #tpu.memory_space<vmem>>, vector<1x128xf32>
      %35 = vector.broadcast %34 : vector<1x128xf32> to vector<128x128xf32>
      %36 = arith.addf %33, %35 : vector<128x128xf32>
      %37 = arith.truncf %36 : vector<128x128xf32> to vector<128x128xbf16>
      %c0_21 = arith.constant 0 : index
      %c0_22 = arith.constant 0 : index
      %38 = vector.load %arg8[%c0_21, %c0_22] : memref<128x128xbf16, #tpu.memory_space<vmem>>, vector<128x128xbf16>
      tpu.vector_store %arg8[%c0_21, %c0_22], %37 {strides = array<i32>} : memref<128x128xbf16, #tpu.memory_space<vmem>>, vector<128x128xbf16>,
    } else {
    }
    %c0 = arith.constant 0 : index
    %c0_1 = arith.constant 0 : index
    %3 = vector.load %arg8[%c0, %c0_1] : memref<128x128xbf16, #tpu.memory_space<vmem>>, vector<128x128xbf16>
    %c0_2 = arith.constant 0 : index
    %c0_3 = arith.constant 0 : index
    %4 = vector.load %arg5[%c0_2, %c0_3] : memref<128x128xbf16, #tpu.memory_space<vmem>>, vector<128x128xbf16>
    %cst = arith.constant dense<0.000000e+00> : vector<128x128xf32>
    %5 = tpu.matmul %3, %4, %cst {dimension_numbers = #tpu.dot_dimension_numbers<[1], [0], [0], [1], [0, 0, 1, 1], [], []>} : vector<128x128xbf16>, vector<128x128xbf16>, vector<128x128xf32> -> vector<128x128xf32>
    %c0_4 = arith.constant 0 : index
    %c0_5 = arith.constant 0 : index
    %6 = vector.load %arg6[%c0_4, %c0_5] : memref<1x128xf32, #tpu.memory_space<vmem>>, vector<1x128xf32>
    %7 = vector.broadcast %6 : vector<1x128xf32> to vector<128x128xf32>
    %8 = arith.addf %5, %7 : vector<128x128xf32>
    %c0_6 = arith.constant 0 : index
    %c0_7 = arith.constant 0 : index
    %9 = vector.load %arg2[%c0_6, %c0_7] : memref<128x128xf32, #tpu.memory_space<vmem>>, vector<128x128xf32>
    %10 = arith.addf %8, %9 : vector<128x128xf32>
    %c0_8 = arith.constant 0 : index
    %c0_9 = arith.constant 0 : index
    %11 = vector.load %arg7[%c0_8, %c0_9] : memref<128x128xf32, #tpu.memory_space<vmem>>, vector<128x128xf32>
    tpu.vector_store %arg7[%c0_8, %c0_9], %10 {strides = array<i32>} : memref<128x128xf32, #tpu.memory_space<vmem>>, vector<128x128xf32>,
    return
  }
  func.func @transform_0(%arg0: i32, %arg1: i32) -> (i32, i32) {
    %c0_i32 = arith.constant 0 : i32
    %c0_i32_0 = arith.constant 0 : i32
    return %arg0, %c0_i32 : i32, i32
  }
  func.func @transform_1(%arg0: i32, %arg1: i32) -> (i32, i32) {
    %c0_i32 = arith.constant 0 : i32
    %c0_i32_0 = arith.constant 0 : i32
    %c0_i32_1 = arith.constant 0 : i32
    return %c0_i32, %c0_i32_0 : i32, i32
  }
  func.func @transform_2(%arg0: i32, %arg1: i32) -> (i32, i32) {
    %c0_i32 = arith.constant 0 : i32
    %c0_i32_0 = arith.constant 0 : i32
    %c0_i32_1 = arith.constant 0 : i32
    return %c0_i32, %c0_i32_0 : i32, i32
  }
  func.func @transform_3(%arg0: i32, %arg1: i32) -> (i32, i32) {
    %c0_i32 = arith.constant 0 : i32
    %c0_i32_0 = arith.constant 0 : i32
    return %c0_i32, %arg1 : i32, i32
  }
  func.func @transform_4(%arg0: i32, %arg1: i32) -> (i32, i32) {
    %c0_i32 = arith.constant 0 : i32
    %c0_i32_0 = arith.constant 0 : i32
    return %c0_i32, %arg1 : i32, i32
  }
  func.func @transform_5(%arg0: i32, %arg1: i32) -> (i32, i32) {
    %c0_i32 = arith.constant 0 : i32
    return %arg0, %arg1 : i32, i32
  }
}

module attributes {stable_mosaic.version = 11 : i64} {
  func.func @residual_kernel(%arg0: i32, %arg1: i32, %arg2: memref<128x128xf32, #tpu.memory_space<vmem>>, %arg3: memref<1x128xf32, #tpu.memory_space<vmem>>, %arg4: memref<1x128xf32, #tpu.memory_space<vmem>>, %arg5: memref<128x128xbf16, #tpu.memory_space<vmem>>, %arg6: memref<1x128xf32, #tpu.memory_space<vmem>>, %arg7: memref<128x128xf32, #tpu.memory_space<vmem>>, %arg8: memref<128x128xbf16, #tpu.memory_space<vmem>>) attributes {dimension_semantics = [#tpu.dimension_semantics<parallel>, #tpu.dimension_semantics<arbitrary>], iteration_bounds = array<i64: 1, 1>, scalar_prefetch = 0 : i64, scratch_operands = 1 : i64, tpu.core_type = #tpu.core_type<tc>, window_params = [{transform_indices = @transform_0, window_bounds = array<i64: 128, 128>}, {pipeline_mode = #tpu.pipeline_mode<synchronous>, transform_indices = @transform_1, window_bounds = array<i64: 1, 128>}, {pipeline_mode = #tpu.pipeline_mode<synchronous>, transform_indices = @transform_2, window_bounds = array<i64: 1, 128>}, {transform_indices = @transform_3, window_bounds = array<i64: 128, 128>}, {transform_indices = @transform_4, window_bounds = array<i64: 1, 128>}, {transform_indices = @transform_5, window_bounds = array<i64: 128, 128>}]} {
    %c0_i32 = arith.constant 0 : i32
    %0 = arith.cmpi eq, %arg1, %c0_i32 : i32
    %1 = arith.extui %0 : i1 to i32
    %c0_i32_0 = arith.constant 0 : i32
    %2 = arith.cmpi ne, %1, %c0_i32_0 : i32
    scf.if %2 {
      %c0_10 = arith.constant 0 : index
      %c0_11 = arith.constant 0 : index
      %12 = vector.load %arg2[%c0_10, %c0_11] : memref<128x128xf32, #tpu.memory_space<vmem>>, vector<128x128xf32>
      %cst_12 = arith.constant dense<0.000000e+00> : vector<128xf32>
      %13 = vector.multi_reduction <add>, %12, %cst_12 [1] : vector<128x128xf32> to vector<128xf32>
      %14 = vector.shape_cast %13 : vector<128xf32> to vector<128x1xf32>
      %cst_13 = arith.constant 1.280000e+02 : f32
      %15 = vector.broadcast %cst_13 : f32 to vector<128x1xf32>
      %16 = arith.divf %14, %15 : vector<128x1xf32>
      %17 = arith.mulf %12, %12 : vector<128x128xf32>
      %cst_14 = arith.constant dense<0.000000e+00> : vector<128xf32>
      %18 = vector.multi_reduction <add>, %17, %cst_14 [1] : vector<128x128xf32> to vector<128xf32>
      %19 = vector.shape_cast %18 : vector<128xf32> to vector<128x1xf32>
      %cst_15 = arith.constant 1.280000e+02 : f32
      %20 = vector.broadcast %cst_15 : f32 to vector<128x1xf32>
      %21 = arith.divf %19, %20 : vector<128x1xf32>
      %22 = arith.mulf %16, %16 : vector<128x1xf32>
      %23 = arith.subf %21, %22 : vector<128x1xf32>
      %cst_16 = arith.constant 9.99999974E-6 : f32
      %24 = vector.broadcast %cst_16 : f32 to vector<128x1xf32>
      %25 = arith.addf %23, %24 : vector<128x1xf32>
      %26 = math.rsqrt %25 : vector<128x1xf32>
      %27 = vector.broadcast %16 : vector<128x1xf32> to vector<128x128xf32>
      %28 = arith.subf %12, %27 : vector<128x128xf32>
      %c0_17 = arith.constant 0 : index
      %c0_18 = arith.constant 0 : index
      %29 = vector.load %arg3[%c0_17, %c0_18] : memref<1x128xf32, #tpu.memory_space<vmem>>, vector<1x128xf32>
      %30 = vector.broadcast %26 : vector<128x1xf32> to vector<128x128xf32>
      %31 = vector.broadcast %29 : vector<1x128xf32> to vector<128x128xf32>
      %32 = arith.mulf %30, %31 : vector<128x128xf32>
      %33 = arith.mulf %28, %32 : vector<128x128xf32>
      %c0_19 = arith.constant 0 : index
      %c0_20 = arith.constant 0 : index
      %34 = vector.load %arg4[%c0_19, %c0_20] : memref<1x128xf32, #tpu.memory_space<vmem>>, vector<1x128xf32>
      %35 = vector.broadcast %34 : vector<1x128xf32> to vector<128x128xf32>
      %36 = arith.addf %33, %35 : vector<128x128xf32>
      %37 = arith.truncf %36 : vector<128x128xf32> to vector<128x128xbf16>
      %c0_21 = arith.constant 0 : index
      %c0_22 = arith.constant 0 : index
      %38 = vector.load %arg8[%c0_21, %c0_22] : memref<128x128xbf16, #tpu.memory_space<vmem>>, vector<128x128xbf16>
      tpu.vector_store %arg8[%c0_21, %c0_22], %37 {strides = array<i32>} : memref<128x128xbf16, #tpu.memory_space<vmem>>, vector<128x128xbf16>,
    } else {
    }
    %c0 = arith.constant 0 : index
    %c0_1 = arith.constant 0 : index
    %3 = vector.load %arg8[%c0, %c0_1] : memref<128x128xbf16, #tpu.memory_space<vmem>>, vector<128x128xbf16>
    %c0_2 = arith.constant 0 : index
    %c0_3 = arith.constant 0 : index
    %4 = vector.load %arg5[%c0_2, %c0_3] : memref<128x128xbf16, #tpu.memory_space<vmem>>, vector<128x128xbf16>
    %cst = arith.constant dense<0.000000e+00> : vector<128x128xf32>
    %5 = tpu.matmul %3, %4, %cst {dimension_numbers = #tpu.dot_dimension_numbers<[1], [0], [0], [1], [0, 0, 1, 1], [], []>} : vector<128x128xbf16>, vector<128x128xbf16>, vector<128x128xf32> -> vector<128x128xf32>
    %c0_4 = arith.constant 0 : index
    %c0_5 = arith.constant 0 : index
    %6 = vector.load %arg6[%c0_4, %c0_5] : memref<1x128xf32, #tpu.memory_space<vmem>>, vector<1x128xf32>
    %7 = vector.broadcast %6 : vector<1x128xf32> to vector<128x128xf32>
    %8 = arith.addf %5, %7 : vector<128x128xf32>
    %c0_6 = arith.constant 0 : index
    %c0_7 = arith.constant 0 : index
    %9 = vector.load %arg2[%c0_6, %c0_7] : memref<128x128xf32, #tpu.memory_space<vmem>>, vector<128x128xf32>
    %10 = arith.addf %8, %9 : vector<128x128xf32>
    %c0_8 = arith.constant 0 : index
    %c0_9 = arith.constant 0 : index
    %11 = vector.load %arg7[%c0_8, %c0_9] : memref<128x128xf32, #tpu.memory_space<vmem>>, vector<128x128xf32>
    tpu.vector_store %arg7[%c0_8, %c0_9], %10 {strides = array<i32>} : memref<128x128xf32, #tpu.memory_space<vmem>>, vector<128x128xf32>,
    return
  }
  func.func @transform_0(%arg0: i32, %arg1: i32) -> (i32, i32) {
    %c0_i32 = arith.constant 0 : i32
    %c0_i32_0 = arith.constant 0 : i32
    return %arg0, %c0_i32 : i32, i32
  }
  func.func @transform_1(%arg0: i32, %arg1: i32) -> (i32, i32) {
    %c0_i32 = arith.constant 0 : i32
    %c0_i32_0 = arith.constant 0 : i32
    %c0_i32_1 = arith.constant 0 : i32
    return %c0_i32, %c0_i32_0 : i32, i32
  }
  func.func @transform_2(%arg0: i32, %arg1: i32) -> (i32, i32) {
    %c0_i32 = arith.constant 0 : i32
    %c0_i32_0 = arith.constant 0 : i32
    %c0_i32_1 = arith.constant 0 : i32
    return %c0_i32, %c0_i32_0 : i32, i32
  }
  func.func @transform_3(%arg0: i32, %arg1: i32) -> (i32, i32) {
    %c0_i32 = arith.constant 0 : i32
    %c0_i32_0 = arith.constant 0 : i32
    return %c0_i32, %arg1 : i32, i32
  }
  func.func @transform_4(%arg0: i32, %arg1: i32) -> (i32, i32) {
    %c0_i32 = arith.constant 0 : i32
    %c0_i32_0 = arith.constant 0 : i32
    return %c0_i32, %arg1 : i32, i32
  }
  func.func @transform_5(%arg0: i32, %arg1: i32) -> (i32, i32) {
    %c0_i32 = arith.constant 0 : i32
    return %arg0, %arg1 : i32, i32
  }
}

</mosaic_0001>

<llo_original>
// kernel: tpu_custom_call.1
$region0: #{tpu_custom_call.1}
  #allocation0 [shape = 'u32[]', space=smem, size = 0x4, offset = 0x4, fixed_abs, tag = 'smem constant byte address 0x4 - core index']
  #allocation1 [shape = 'u32[144,128]{1,0:T(1,128)}', space=vmem, size = 0x12000, scoped, tag = 'internal scratch']
  #allocation2 [shape = 'bf16[128,128]{1,0:T(8,128)(2,1)}', space=vmem, size = 0x8000, scoped, tag = 'scratch operand']
  %s0 = inlined_call_operand.hbm [shape: f32[128,128], index: 0, kind: input, shape index: {}]
  %s1 = inlined_call_operand.vmem [shape: f32[1,128], index: 1, kind: input, shape index: {}]
  %s2 = inlined_call_operand.vmem [shape: f32[1,128], index: 2, kind: input, shape index: {}]
  %s3 = inlined_call_operand.hbm [shape: bf16[128,128], index: 3, kind: input, shape index: {}]
  %s4 = inlined_call_operand.vmem [shape: f32[1,128], index: 4, kind: input, shape index: {}]
  %s5 = inlined_call_operand.hbm [shape: f32[128,128], index: 5, kind: output, shape index: {}]
  %s6 = sld [smem:[#allocation0]]
  $region42: #{tpu_custom_call.1} parent=0
    _
  %s8 = ssub.s32 1, %s6
  %s9 = scalar_select 0, %s8, %s6
  $region1: #{tpu_custom_call.1} parent=0
    #allocation3 [shape = 'u8[65536]{0}', space=vmem, size = 0x10000, scoped, tag = 'input window, operand 0, single buffered']
    #allocation4 [shape = 's32[1]{0}', space=sflag, size = 0x4, scoped, tag = 'scoped memory for tpu_custom_call.1']
    #allocation5 [shape = 's32[1]{0}', space=sflag, size = 0x4, scoped, tag = 'scoped memory for tpu_custom_call.1']
    #allocation6 [shape = 'u8[32768]{0}', space=vmem, size = 0x8000, scoped, tag = 'input window, operand 3, single buffered']
    #allocation7 [shape = 's32[1]{0}', space=sflag, size = 0x4, scoped, tag = 'scoped memory for tpu_custom_call.1']
    #allocation8 [shape = 'u8[65536]{0}', space=vmem, size = 0x10000, scoped, tag = 'output window, operand 0, single buffered']
    %10 = vsyncpa [#allocation4], 0
    %11 = vsyncpa [#allocation7], 0
    %12 = vsyncpa [#allocation5], 0
    // Predicated region
    $region2: #{tpu_custom_call.1} parent=1 // pred_check
      _
    $region3: #{tpu_custom_call.1} parent=1 // pred_check_branch
      %14 = sbr.rel (0) target = $region5
    $region4: #{tpu_custom_call.1} parent=1 // pred_region
      %s16 = ssub.s32 2048, 2048
      %17 = vsyncadd [#allocation4], %s16
      %s18 = sshll.u32 [#allocation3], 4
      %s19 = int_to_ptr.vmem [resolvable:$true] %s18
      %24 = dma.hbm_to_vmem [thread:$0]  %s0, 2048, %s19, [#allocation4], 128, 128, 8
    $region5: #{tpu_custom_call.1} parent=1 // pred_fallthru
      _
    // Predicated region
    $region6: #{tpu_custom_call.1} parent=1 // pred_check
      _
    $region7: #{tpu_custom_call.1} parent=1 // pred_check_branch
      %26 = sbr.rel (0) target = $region9
    $region8: #{tpu_custom_call.1} parent=1 // pred_region
      _
    $region9: #{tpu_custom_call.1} parent=1 // pred_fallthru
      _
    // Predicated region
    $region10: #{tpu_custom_call.1} parent=1 // pred_check
      _
    $region11: #{tpu_custom_call.1} parent=1 // pred_check_branch
      %28 = sbr.rel (0) target = $region13
    $region12: #{tpu_custom_call.1} parent=1 // pred_region
      _
    $region13: #{tpu_custom_call.1} parent=1 // pred_fallthru
      _
    // Predicated region
    $region14: #{tpu_custom_call.1} parent=1 // pred_check
      _
    $region15: #{tpu_custom_call.1} parent=1 // pred_check_branch
      %30 = sbr.rel (0) target = $region17
    $region16: #{tpu_custom_call.1} parent=1 // pred_region
      %s32 = ssub.s32 1024, 1024
      %33 = vsyncadd [#allocation7], %s32
      %s34 = sshll.u32 [#allocation6], 4
      %s35 = int_to_ptr.vmem [resolvable:$true] %s34
      %40 = dma.hbm_to_vmem [thread:$0]  %s3, 1024, %s35, [#allocation7], 64, 64, 4
    $region17: #{tpu_custom_call.1} parent=1 // pred_fallthru
      _
    // Predicated region
    $region18: #{tpu_custom_call.1} parent=1 // pred_check
      _
    $region19: #{tpu_custom_call.1} parent=1 // pred_check_branch
      %42 = sbr.rel (0) target = $region21
    $region20: #{tpu_custom_call.1} parent=1 // pred_region
      _
    $region21: #{tpu_custom_call.1} parent=1 // pred_fallthru
      _
    // Predicated region
    $region22: #{tpu_custom_call.1} parent=1 // pred_check
      _
    $region23: #{tpu_custom_call.1} parent=1 // pred_check_branch
      %44 = sbr.rel (0) target = $region25
    $region24: #{tpu_custom_call.1} parent=1 // pred_region
      %45 = dma.done [#allocation4], 2048
    $region25: #{tpu_custom_call.1} parent=1 // pred_fallthru
      _
    // Predicated region
    $region26: #{tpu_custom_call.1} parent=1 // pred_check
      _
    $region27: #{tpu_custom_call.1} parent=1 // pred_check_branch
      %47 = sbr.rel (0) target = $region29
    $region28: #{tpu_custom_call.1} parent=1 // pred_region
      %48 = dma.done [#allocation7], 1024
    $region29: #{tpu_custom_call.1} parent=1 // pred_fallthru
      _
    %p50 = scmp.eq.s32.totalorder 0, 0
    // Predicated region
    $region30: #{tpu_custom_call.1} parent=1 // pred_check
      %p51 = pneg %p50
    $region31: #{tpu_custom_call.1} parent=1 // pred_check_branch
      %53 = sbr.rel (%p51) target = $region33
    $region32: #{tpu_custom_call.1} parent=1 // pred_region
      %v54 = vld [vmem:[#allocation3] sm:$0xff]
      %v55 = vld [vmem:[#allocation3 + $0x8] sm:$0xff]
      %v56 = vld [vmem:[#allocation3 + $0x10] sm:$0xff]
      %v57 = vld [vmem:[#allocation3 + $0x18] sm:$0xff]
      %v58 = vld [vmem:[#allocation3 + $0x20] sm:$0xff]
      %v59 = vld [vmem:[#allocation3 + $0x28] sm:$0xff]
      %v60 = vld [vmem:[#allocation3 + $0x30] sm:$0xff]
      %v61 = vld [vmem:[#allocation3 + $0x38] sm:$0xff]
      %v62 = vld [vmem:[#allocation3 + $0x40] sm:$0xff]
      %v63 = vld [vmem:[#allocation3 + $0x48] sm:$0xff]
      %v64 = vld [vmem:[#allocation3 + $0x50] sm:$0xff]
      %v65 = vld [vmem:[#allocation3 + $0x58] sm:$0xff]
      %v66 = vld [vmem:[#allocation3 + $0x60] sm:$0xff]
      %v67 = vld [vmem:[#allocation3 + $0x68] sm:$0xff]
      %v68 = vld [vmem:[#allocation3 + $0x70] sm:$0xff]
      %v69 = vld [vmem:[#allocation3 + $0x78] sm:$0xff]
      %70 = vadd.xlane.f32.xlu0 %v54
      %v71 = vpop.xlane.xlu0 %70
      %72 = vadd.xlane.f32.xlu0 %v55
      %v73 = vpop.xlane.xlu0 %72
      %74 = vadd.xlane.f32.xlu0 %v56
      %v75 = vpop.xlane.xlu0 %74
      %76 = vadd.xlane.f32.xlu0 %v57
      %v77 = vpop.xlane.xlu0 %76
      %78 = vadd.xlane.f32.xlu0 %v58
      %v79 = vpop.xlane.xlu0 %78
      %80 = vadd.xlane.f32.xlu0 %v59
      %v81 = vpop.xlane.xlu0 %80
      %82 = vadd.xlane.f32.xlu0 %v60
      %v83 = vpop.xlane.xlu0 %82
      %84 = vadd.xlane.f32.xlu0 %v61
      %v85 = vpop.xlane.xlu0 %84
      %86 = vadd.xlane.f32.xlu0 %v62
      %v87 = vpop.xlane.xlu0 %86
      %88 = vadd.xlane.f32.xlu0 %v63
      %v89 = vpop.xlane.xlu0 %88
      %90 = vadd.xlane.f32.xlu0 %v64
      %v91 = vpop.xlane.xlu0 %90
      %92 = vadd.xlane.f32.xlu0 %v65
      %v93 = vpop.xlane.xlu0 %92
      %94 = vadd.xlane.f32.xlu0 %v66
      %v95 = vpop.xlane.xlu0 %94
      %96 = vadd.xlane.f32.xlu0 %v67
      %v97 = vpop.xlane.xlu0 %96
      %98 = vadd.xlane.f32.xlu0 %v68
      %v99 = vpop.xlane.xlu0 %98
      %100 = vadd.xlane.f32.xlu0 %v69
      %v101 = vpop.xlane.xlu0 %100
      %v102 = vrcp.pop 128.0
      %v103 = vmul.f32 %v71, %v102
      %v104 = vmul.f32 %v73, %v102
      %v105 = vmul.f32 %v75, %v102
      %v106 = vmul.f32 %v77, %v102
      %v107 = vmul.f32 %v79, %v102
      %v108 = vmul.f32 %v81, %v102
      %v109 = vmul.f32 %v83, %v102
      %v110 = vmul.f32 %v85, %v102
      %v111 = vmul.f32 %v87, %v102
      %v112 = vmul.f32 %v89, %v102
      %v113 = vmul.f32 %v91, %v102
      %v114 = vmul.f32 %v93, %v102
      %v115 = vmul.f32 %v95, %v102
      %v116 = vmul.f32 %v97, %v102
      %v117 = vmul.f32 %v99, %v102
      %v118 = vmul.f32 %v101, %v102
      %v119 = vmul.f32 %v54, %v54
      %v120 = vmul.f32 %v55, %v55
      %v121 = vmul.f32 %v56, %v56
      %v122 = vmul.f32 %v57, %v57
      %v123 = vmul.f32 %v58, %v58
      %v124 = vmul.f32 %v59, %v59
      %v125 = vmul.f32 %v60, %v60
      %v126 = vmul.f32 %v61, %v61
      %v127 = vmul.f32 %v62, %v62
      %v128 = vmul.f32 %v63, %v63
      %v129 = vmul.f32 %v64, %v64
      %v130 = vmul.f32 %v65, %v65
      %v131 = vmul.f32 %v66, %v66
      %v132 = vmul.f32 %v67, %v67
      %v133 = vmul.f32 %v68, %v68
      %v134 = vmul.f32 %v69, %v69
      %135 = vadd.xlane.f32.xlu0 %v119
      %v136 = vpop.xlane.xlu0 %135
      %137 = vadd.xlane.f32.xlu0 %v120
      %v138 = vpop.xlane.xlu0 %137
      %139 = vadd.xlane.f32.xlu0 %v121
      %v140 = vpop.xlane.xlu0 %139
      %141 = vadd.xlane.f32.xlu0 %v122
      %v142 = vpop.xlane.xlu0 %141
      %143 = vadd.xlane.f32.xlu0 %v123
      %v144 = vpop.xlane.xlu0 %143
      %145 = vadd.xlane.f32.xlu0 %v124
      %v146 = vpop.xlane.xlu0 %145
      %147 = vadd.xlane.f32.xlu0 %v125
      %v148 = vpop.xlane.xlu0 %147
      %149 = vadd.xlane.f32.xlu0 %v126
      %v150 = vpop.xlane.xlu0 %149
      %151 = vadd.xlane.f32.xlu0 %v127
      %v152 = vpop.xlane.xlu0 %151
      %153 = vadd.xlane.f32.xlu0 %v128
      %v154 = vpop.xlane.xlu0 %153
      %155 = vadd.xlane.f32.xlu0 %v129
      %v156 = vpop.xlane.xlu0 %155
      %157 = vadd.xlane.f32.xlu0 %v130
      %v158 = vpop.xlane.xlu0 %157
      %159 = vadd.xlane.f32.xlu0 %v131
      %v160 = vpop.xlane.xlu0 %159
      %161 = vadd.xlane.f32.xlu0 %v132
      %v162 = vpop.xlane.xlu0 %161
      %163 = vadd.xlane.f32.xlu0 %v133
      %v164 = vpop.xlane.xlu0 %163
      %165 = vadd.xlane.f32.xlu0 %v134
      %v166 = vpop.xlane.xlu0 %165
      %v167 = vmul.f32 %v136, %v102
      %v168 = vmul.f32 %v138, %v102
      %v169 = vmul.f32 %v140, %v102
      %v170 = vmul.f32 %v142, %v102
      %v171 = vmul.f32 %v144, %v102
      %v172 = vmul.f32 %v146, %v102
      %v173 = vmul.f32 %v148, %v102
      %v174 = vmul.f32 %v150, %v102
      %v175 = vmul.f32 %v152, %v102
      %v176 = vmul.f32 %v154, %v102
      %v177 = vmul.f32 %v156, %v102
      %v178 = vmul.f32 %v158, %v102
      %v179 = vmul.f32 %v160, %v102
      %v180 = vmul.f32 %v162, %v102
      %v181 = vmul.f32 %v164, %v102
      %v182 = vmul.f32 %v166, %v102
      %v183 = vmul.f32 %v103, %v103
      %v184 = vmul.f32 %v104, %v104
      %v185 = vmul.f32 %v105, %v105
      %v186 = vmul.f32 %v106, %v106
      %v187 = vmul.f32 %v107, %v107
      %v188 = vmul.f32 %v108, %v108
      %v189 = vmul.f32 %v109, %v109
      %v190 = vmul.f32 %v110, %v110
      %v191 = vmul.f32 %v111, %v111
      %v192 = vmul.f32 %v112, %v112
      %v193 = vmul.f32 %v113, %v113
      %v194 = vmul.f32 %v114, %v114
      %v195 = vmul.f32 %v115, %v115
      %v196 = vmul.f32 %v116, %v116
      %v197 = vmul.f32 %v117, %v117
      %v198 = vmul.f32 %v118, %v118
      %v199 = vsub.f32 %v167, %v183
      %v200 = vsub.f32 %v168, %v184
      %v201 = vsub.f32 %v169, %v185
      %v202 = vsub.f32 %v170, %v186
      %v203 = vsub.f32 %v171, %v187
      %v204 = vsub.f32 %v172, %v188
      %v205 = vsub.f32 %v173, %v189
      %v206 = vsub.f32 %v174, %v190
      %v207 = vsub.f32 %v175, %v191
      %v208 = vsub.f32 %v176, %v192
      %v209 = vsub.f32 %v177, %v193
      %v210 = vsub.f32 %v178, %v194
      %v211 = vsub.f32 %v179, %v195
      %v212 = vsub.f32 %v180, %v196
      %v213 = vsub.f32 %v181, %v197
      %v214 = vsub.f32 %v182, %v198
      %v215 = vadd.f32 %v199, 1e-05
      %v216 = vadd.f32 %v200, 1e-05
      %v217 = vadd.f32 %v201, 1e-05
      %v218 = vadd.f32 %v202, 1e-05
      %v219 = vadd.f32 %v203, 1e-05
      %v220 = vadd.f32 %v204, 1e-05
      %v221 = vadd.f32 %v205, 1e-05
      %v222 = vadd.f32 %v206, 1e-05
      %v223 = vadd.f32 %v207, 1e-05
      %v224 = vadd.f32 %v208, 1e-05
      %v225 = vadd.f32 %v209, 1e-05
      %v226 = vadd.f32 %v210, 1e-05
      %v227 = vadd.f32 %v211, 1e-05
      %v228 = vadd.f32 %v212, 1e-05
      %v229 = vadd.f32 %v213, 1e-05
      %v230 = vadd.f32 %v214, 1e-05
      %v231 = vrsqrt.pop %v215
      %v232 = vrsqrt.pop %v216
      %v233 = vrsqrt.pop %v217
      %v234 = vrsqrt.pop %v218
      %v235 = vrsqrt.pop %v219
      %v236 = vrsqrt.pop %v220
      %v237 = vrsqrt.pop %v221
      %v238 = vrsqrt.pop %v222
      %v239 = vrsqrt.pop %v223
      %v240 = vrsqrt.pop %v224
      %v241 = vrsqrt.pop %v225
      %v242 = vrsqrt.pop %v226
      %v243 = vrsqrt.pop %v227
      %v244 = vrsqrt.pop %v228
      %v245 = vrsqrt.pop %v229
      %v246 = vrsqrt.pop %v230
      %v247 = vsub.f32 %v54, %v103
      %v248 = vsub.f32 %v55, %v104
      %v249 = vsub.f32 %v56, %v105
      %v250 = vsub.f32 %v57, %v106
      %v251 = vsub.f32 %v58, %v107
      %v252 = vsub.f32 %v59, %v108
      %v253 = vsub.f32 %v60, %v109
      %v254 = vsub.f32 %v61, %v110
      %v255 = vsub.f32 %v62, %v111
      %v256 = vsub.f32 %v63, %v112
      %v257 = vsub.f32 %v64, %v113
      %v258 = vsub.f32 %v65, %v114
      %v259 = vsub.f32 %v66, %v115
      %v260 = vsub.f32 %v67, %v116
      %v261 = vsub.f32 %v68, %v117
      %v262 = vsub.f32 %v69, %v118
      %v263 = vld [vmem:[%s1] sm:$0x1]
      %v265 = vlaneseq
      %v266 = vshrl.u32 %v265, 7
      %v267 = vsub.s32 0, %v266
      %v268 = vrot.slane %v263, %v267
      %v270 = vmul.f32 %v231, %v268
      %v271 = vmul.f32 %v232, %v268
      %v272 = vmul.f32 %v233, %v268
      %v273 = vmul.f32 %v234, %v268
      %v274 = vmul.f32 %v235, %v268
      %v275 = vmul.f32 %v236, %v268
      %v276 = vmul.f32 %v237, %v268
      %v277 = vmul.f32 %v238, %v268
      %v278 = vmul.f32 %v239, %v268
      %v279 = vmul.f32 %v240, %v268
      %v280 = vmul.f32 %v241, %v268
      %v281 = vmul.f32 %v242, %v268
      %v282 = vmul.f32 %v243, %v268
      %v283 = vmul.f32 %v244, %v268
      %v284 = vmul.f32 %v245, %v268
      %v285 = vmul.f32 %v246, %v268
      %v286 = vmul.f32 %v247, %v270
      %v287 = vmul.f32 %v248, %v271
      %v288 = vmul.f32 %v249, %v272
      %v289 = vmul.f32 %v250, %v273
      %v290 = vmul.f32 %v251, %v274
      %v291 = vmul.f32 %v252, %v275
      %v292 = vmul.f32 %v253, %v276
      %v293 = vmul.f32 %v254, %v277
      %v294 = vmul.f32 %v255, %v278
      %v295 = vmul.f32 %v256, %v279
      %v296 = vmul.f32 %v257, %v280
      %v297 = vmul.f32 %v258, %v281
      %v298 = vmul.f32 %v259, %v282
      %v299 = vmul.f32 %v260, %v283
      %v300 = vmul.f32 %v261, %v284
      %v301 = vmul.f32 %v262, %v285
      %v302 = vld [vmem:[%s2] sm:$0x1]
      %v304 = vlaneseq
      %v305 = vshrl.u32 %v304, 7
      %v306 = vsub.s32 0, %v305
      %v307 = vrot.slane %v302, %v306
      %v309 = vadd.f32 %v286, %v307
      %v310 = vadd.f32 %v287, %v307
      %v311 = vadd.f32 %v288, %v307
      %v312 = vadd.f32 %v289, %v307
      %v313 = vadd.f32 %v290, %v307
      %v314 = vadd.f32 %v291, %v307
      %v315 = vadd.f32 %v292, %v307
      %v316 = vadd.f32 %v293, %v307
      %v317 = vadd.f32 %v294, %v307
      %v318 = vadd.f32 %v295, %v307
      %v319 = vadd.f32 %v296, %v307
      %v320 = vadd.f32 %v297, %v307
      %v321 = vadd.f32 %v298, %v307
      %v322 = vadd.f32 %v299, %v307
      %v323 = vadd.f32 %v300, %v307
      %v324 = vadd.f32 %v301, %v307
      %v325 = vpack.c.bf16 %v310, %v309
      %v326 = vpack.c.bf16 %v312, %v311
      %v327 = vpack.c.bf16 %v314, %v313
      %v328 = vpack.c.bf16 %v316, %v315
      %v329 = vpack.c.bf16 %v318, %v317
      %v330 = vpack.c.bf16 %v320, %v319
      %v331 = vpack.c.bf16 %v322, %v321
      %v332 = vpack.c.bf16 %v324, %v323
      %v341 = vunpack.c.l.b16 %v325
      %v342 = vunpack.c.h.b16 %v325
      %v343 = vunpack.c.l.b16 %v326
      %v344 = vunpack.c.h.b16 %v326
      %v345 = vunpack.c.l.b16 %v327
      %v346 = vunpack.c.h.b16 %v327
      %v347 = vunpack.c.l.b16 %v328
      %v348 = vunpack.c.h.b16 %v328
      %v349 = vunpack.c.l.b16 %v329
      %v350 = vunpack.c.h.b16 %v329
      %v351 = vunpack.c.l.b16 %v330
      %v352 = vunpack.c.h.b16 %v330
      %v353 = vunpack.c.l.b16 %v331
      %v354 = vunpack.c.h.b16 %v331
      %v355 = vunpack.c.l.b16 %v332
      %v356 = vunpack.c.h.b16 %v332
      %v357 = vpack.c.b16 %v341, %v341
      %v358 = vpack.c.b16 %v342, %v342
      %v359 = vpack.c.b16 %v343, %v343
      %v360 = vpack.c.b16 %v344, %v344
      %v361 = vpack.c.b16 %v345, %v345
      %v362 = vpack.c.b16 %v346, %v346
      %v363 = vpack.c.b16 %v347, %v347
      %v364 = vpack.c.b16 %v348, %v348
      %v365 = vpack.c.b16 %v349, %v349
      %v366 = vpack.c.b16 %v350, %v350
      %v367 = vpack.c.b16 %v351, %v351
      %v368 = vpack.c.b16 %v352, %v352
      %v369 = vpack.c.b16 %v353, %v353
      %v370 = vpack.c.b16 %v354, %v354
      %v371 = vpack.c.b16 %v355, %v355
      %v372 = vpack.c.b16 %v356, %v356
      %389 = vst [vmem:[#allocation2] sm:$0xf] %v357
      %390 = vst [vmem:[#allocation2 + $0x4] sm:$0xf] %v358
      %391 = vst [vmem:[#allocation2 + $0x8] sm:$0xf] %v359
      %392 = vst [vmem:[#allocation2 + $0xc] sm:$0xf] %v360
      %393 = vst [vmem:[#allocation2 + $0x10] sm:$0xf] %v361
      %394 = vst [vmem:[#allocation2 + $0x14] sm:$0xf] %v362
      %395 = vst [vmem:[#allocation2 + $0x18] sm:$0xf] %v363
      %396 = vst [vmem:[#allocation2 + $0x1c] sm:$0xf] %v364
      %397 = vst [vmem:[#allocation2 + $0x20] sm:$0xf] %v365
      %398 = vst [vmem:[#allocation2 + $0x24] sm:$0xf] %v366
      %399 = vst [vmem:[#allocation2 + $0x28] sm:$0xf] %v367
      %400 = vst [vmem:[#allocation2 + $0x2c] sm:$0xf] %v368
      %401 = vst [vmem:[#allocation2 + $0x30] sm:$0xf] %v369
      %402 = vst [vmem:[#allocation2 + $0x34] sm:$0xf] %v370
      %403 = vst [vmem:[#allocation2 + $0x38] sm:$0xf] %v371
      %404 = vst [vmem:[#allocation2 + $0x3c] sm:$0xf] %v372
    $region33: #{tpu_custom_call.1} parent=1 // pred_fallthru
      _
    %v405 = vld [vmem:[#allocation2] sm:$0xf]
    %v406 = vld [vmem:[#allocation2 + $0x4] sm:$0xf]
    %v407 = vld [vmem:[#allocation2 + $0x8] sm:$0xf]
    %v408 = vld [vmem:[#allocation2 + $0xc] sm:$0xf]
    %v409 = vld [vmem:[#allocation2 + $0x10] sm:$0xf]
    %v410 = vld [vmem:[#allocation2 + $0x14] sm:$0xf]
    %v411 = vld [vmem:[#allocation2 + $0x18] sm:$0xf]
    %v412 = vld [vmem:[#allocation2 + $0x1c] sm:$0xf]
    %v413 = vld [vmem:[#allocation2 + $0x20] sm:$0xf]
    %v414 = vld [vmem:[#allocation2 + $0x24] sm:$0xf]
    %v415 = vld [vmem:[#allocation2 + $0x28] sm:$0xf]
    %v416 = vld [vmem:[#allocation2 + $0x2c] sm:$0xf]
    %v417 = vld [vmem:[#allocation2 + $0x30] sm:$0xf]
    %v418 = vld [vmem:[#allocation2 + $0x34] sm:$0xf]
    %v419 = vld [vmem:[#allocation2 + $0x38] sm:$0xf]
    %v420 = vld [vmem:[#allocation2 + $0x3c] sm:$0xf]
    %v421 = vld [vmem:[#allocation6] sm:$0xf]
    %v422 = vld [vmem:[#allocation6 + $0x4] sm:$0xf]
    %v423 = vld [vmem:[#allocation6 + $0x8] sm:$0xf]
    %v424 = vld [vmem:[#allocation6 + $0xc] sm:$0xf]
    %v425 = vld [vmem:[#allocation6 + $0x10] sm:$0xf]
    %v426 = vld [vmem:[#allocation6 + $0x14] sm:$0xf]
    %v427 = vld [vmem:[#allocation6 + $0x18] sm:$0xf]
    %v428 = vld [vmem:[#allocation6 + $0x1c] sm:$0xf]
    %v429 = vld [vmem:[#allocation6 + $0x20] sm:$0xf]
    %v430 = vld [vmem:[#allocation6 + $0x24] sm:$0xf]
    %v431 = vld [vmem:[#allocation6 + $0x28] sm:$0xf]
    %v432 = vld [vmem:[#allocation6 + $0x2c] sm:$0xf]
    %v433 = vld [vmem:[#allocation6 + $0x30] sm:$0xf]
    %v434 = vld [vmem:[#allocation6 + $0x34] sm:$0xf]
    %v435 = vld [vmem:[#allocation6 + $0x38] sm:$0xf]
    %v436 = vld [vmem:[#allocation6 + $0x3c] sm:$0xf]
    %v437 = vld [vmem:[%s4] sm:$0x1]
    %v439 = vlaneseq
    %v440 = vshrl.u32 %v439, 7
    %v441 = vsub.s32 0, %v440
    %v442 = vrot.slane %v437, %v441
    %v460 = vunpack.c.l.b16 %v405
    %v461 = vunpack.c.l.b16 %v406
    %v462 = vunpack.c.l.b16 %v407
    %v463 = vunpack.c.l.b16 %v408
    %v464 = vunpack.c.l.b16 %v409
    %v465 = vunpack.c.l.b16 %v410
    %v466 = vunpack.c.l.b16 %v411
    %v467 = vunpack.c.l.b16 %v412
    %v468 = vunpack.c.l.b16 %v413
    %v469 = vunpack.c.l.b16 %v414
    %v470 = vunpack.c.l.b16 %v415
    %v471 = vunpack.c.l.b16 %v416
    %v472 = vunpack.c.l.b16 %v417
    %v473 = vunpack.c.l.b16 %v418
    %v474 = vunpack.c.l.b16 %v419
    %v475 = vunpack.c.l.b16 %v420
    %v476 = vpack.c.b16 %v461, %v460
    %v477 = vpack.c.b16 %v463, %v462
    %v478 = vpack.c.b16 %v465, %v464
    %v479 = vpack.c.b16 %v467, %v466
    %v480 = vpack.c.b16 %v469, %v468
    %v481 = vpack.c.b16 %v471, %v470
    %v482 = vpack.c.b16 %v473, %v472
    %v483 = vpack.c.b16 %v475, %v474
    %v508 = vunpack.c.l.b16 %v421
    %v509 = vunpack.c.l.b16 %v422
    %v510 = vunpack.c.l.b16 %v423
    %v511 = vunpack.c.l.b16 %v424
    %v512 = vunpack.c.l.b16 %v425
    %v513 = vunpack.c.l.b16 %v426
    %v514 = vunpack.c.l.b16 %v427
    %v515 = vunpack.c.l.b16 %v428
    %v516 = vunpack.c.l.b16 %v429
    %v517 = vunpack.c.l.b16 %v430
    %v518 = vunpack.c.l.b16 %v431
    %v519 = vunpack.c.l.b16 %v432
    %v520 = vunpack.c.l.b16 %v433
    %v521 = vunpack.c.l.b16 %v434
    %v522 = vunpack.c.l.b16 %v435
    %v523 = vunpack.c.l.b16 %v436
    %v524 = vpack.c.b16 %v509, %v508
    %v525 = vpack.c.b16 %v511, %v510
    %v526 = vpack.c.b16 %v513, %v512
    %v527 = vpack.c.b16 %v515, %v514
    %v528 = vpack.c.b16 %v517, %v516
    %v529 = vpack.c.b16 %v519, %v518
    %v530 = vpack.c.b16 %v521, %v520
    %v531 = vpack.c.b16 %v523, %v522
    %540 = vmatprep.subr.bf16.mxu0 0
    %541 = vmatpush1.bf16.msra.mxu0 %v531
    %542 = vmatprep.subr.bf16.mxu0 0
    %543 = vmatpush1.bf16.msra.mxu0 %v530
    %544 = vmatprep.subr.bf16.mxu0 0
    %545 = vmatpush1.bf16.msra.mxu0 %v529
    %546 = vmatprep.subr.bf16.mxu0 0
    %547 = vmatpush1.bf16.msra.mxu0 %v528
    %548 = vmatprep.subr.bf16.mxu0 0
    %549 = vmatpush1.bf16.msra.mxu0 %v527
    %550 = vmatprep.subr.bf16.mxu0 0
    %551 = vmatpush1.bf16.msra.mxu0 %v526
    %552 = vmatprep.subr.bf16.mxu0 0
    %553 = vmatpush1.bf16.msra.mxu0 %v525
    %554 = vmatprep.subr.bf16.mxu0 0
    %555 = vmatpush1.bf16.msra.mxu0 %v524
    %556 = vmatprep.subr.bf16.mxu0 0
    %557 = vmatpush2.bf16.msra.mxu0 0
    %558 = vmatprep.subr.bf16.mxu0 0
    %559 = vmatpush2.bf16.msra.mxu0 0
    %560 = vmatprep.subr.bf16.mxu0 0
    %561 = vmatpush2.bf16.msra.mxu0 0
    %562 = vmatprep.subr.bf16.mxu0 0
    %563 = vmatpush2.bf16.msra.mxu0 0
    %564 = vmatprep.subr.bf16.mxu0 0
    %565 = vmatpush2.bf16.msra.mxu0 0
    %566 = vmatprep.subr.bf16.mxu0 0
    %567 = vmatpush2.bf16.msra.mxu0 0
    %568 = vmatprep.subr.bf16.mxu0 0
    %569 = vmatpush2.bf16.msra.mxu0 0
    %570 = vmatprep.subr.bf16.mxu0 0
    %571 = vmatpush2.bf16.msra.mxu0 0
    %572 = vmatprep.mubr.bf16.mxu0 0
    %573 = vmatmul.mubr.bf16.gmra.mxu0 %v476
    %v574 = vpop.f32.mrf.mxu0
    %v575 = vadd.f32 %v442, %v574
    %v576 = vpop.f32.mrf.mxu0
    %v577 = vpop.f32.mrf.mxu0
    %v578 = vadd.f32 %v442, %v577
    %v579 = vpop.f32.mrf.mxu0
    %580 = vmatprep.mubr.bf16.mxu0 0
    %581 = vmatmul.mubr.bf16.gmra.mxu0 %v477
    %v582 = vpop.f32.mrf.mxu0
    %v583 = vadd.f32 %v442, %v582
    %v584 = vpop.f32.mrf.mxu0
    %v585 = vpop.f32.mrf.mxu0
    %v586 = vadd.f32 %v442, %v585
    %v587 = vpop.f32.mrf.mxu0
    %588 = vmatprep.mubr.bf16.mxu0 0
    %589 = vmatmul.mubr.bf16.gmra.mxu0 %v478
    %v590 = vpop.f32.mrf.mxu0
    %v591 = vadd.f32 %v442, %v590
    %v592 = vpop.f32.mrf.mxu0
    %v593 = vpop.f32.mrf.mxu0
    %v594 = vadd.f32 %v442, %v593
    %v595 = vpop.f32.mrf.mxu0
    %596 = vmatprep.mubr.bf16.mxu0 0
    %597 = vmatmul.mubr.bf16.gmra.mxu0 %v479
    %v598 = vpop.f32.mrf.mxu0
    %v599 = vadd.f32 %v442, %v598
    %v600 = vpop.f32.mrf.mxu0
    %v601 = vpop.f32.mrf.mxu0
    %v602 = vadd.f32 %v442, %v601
    %v603 = vpop.f32.mrf.mxu0
    %604 = vmatprep.mubr.bf16.mxu0 0
    %605 = vmatmul.mubr.bf16.gmra.mxu0 %v480
    %v606 = vpop.f32.mrf.mxu0
    %v607 = vadd.f32 %v442, %v606
    %v608 = vpop.f32.mrf.mxu0
    %v609 = vpop.f32.mrf.mxu0
    %v610 = vadd.f32 %v442, %v609
    %v611 = vpop.f32.mrf.mxu0
    %612 = vmatprep.mubr.bf16.mxu0 0
    %613 = vmatmul.mubr.bf16.gmra.mxu0 %v481
    %v614 = vpop.f32.mrf.mxu0
    %v615 = vadd.f32 %v442, %v614
    %v616 = vpop.f32.mrf.mxu0
    %v617 = vpop.f32.mrf.mxu0
    %v618 = vadd.f32 %v442, %v617
    %v619 = vpop.f32.mrf.mxu0
    %620 = vmatprep.mubr.bf16.mxu0 0
    %621 = vmatmul.mubr.bf16.gmra.mxu0 %v482
    %v622 = vpop.f32.mrf.mxu0
    %v623 = vadd.f32 %v442, %v622
    %v624 = vpop.f32.mrf.mxu0
    %v625 = vpop.f32.mrf.mxu0
    %v626 = vadd.f32 %v442, %v625
    %v627 = vpop.f32.mrf.mxu0
    %628 = vmatprep.mubr.bf16.mxu0 0
    %629 = vmatmul.mubr.bf16.gmra.mxu0 %v483
    %v630 = vpop.f32.mrf.mxu0
    %v631 = vadd.f32 %v442, %v630
    %v632 = vpop.f32.mrf.mxu0
    %v633 = vpop.f32.mrf.mxu0
    %v634 = vadd.f32 %v442, %v633
    %v635 = vpop.f32.mrf.mxu0
    %636 = vdwg.mxu0
    %v637 = vld [vmem:[#allocation3] sm:$0xff]
    %v638 = vld [vmem:[#allocation3 + $0x8] sm:$0xff]
    %v639 = vld [vmem:[#allocation3 + $0x10] sm:$0xff]
    %v640 = vld [vmem:[#allocation3 + $0x18] sm:$0xff]
    %v641 = vld [vmem:[#allocation3 + $0x20] sm:$0xff]
    %v642 = vld [vmem:[#allocation3 + $0x28] sm:$0xff]
    %v643 = vld [vmem:[#allocation3 + $0x30] sm:$0xff]
    %v644 = vld [vmem:[#allocation3 + $0x38] sm:$0xff]
    %v645 = vld [vmem:[#allocation3 + $0x40] sm:$0xff]
    %v646 = vld [vmem:[#allocation3 + $0x48] sm:$0xff]
    %v647 = vld [vmem:[#allocation3 + $0x50] sm:$0xff]
    %v648 = vld [vmem:[#allocation3 + $0x58] sm:$0xff]
    %v649 = vld [vmem:[#allocation3 + $0x60] sm:$0xff]
    %v650 = vld [vmem:[#allocation3 + $0x68] sm:$0xff]
    %v651 = vld [vmem:[#allocation3 + $0x70] sm:$0xff]
    %v652 = vld [vmem:[#allocation3 + $0x78] sm:$0xff]
    %v653 = vadd.f32 %v575, %v637
    %v654 = vadd.f32 %v578, %v638
    %v655 = vadd.f32 %v583, %v639
    %v656 = vadd.f32 %v586, %v640
    %v657 = vadd.f32 %v591, %v641
    %v658 = vadd.f32 %v594, %v642
    %v659 = vadd.f32 %v599, %v643
    %v660 = vadd.f32 %v602, %v644
    %v661 = vadd.f32 %v607, %v645
    %v662 = vadd.f32 %v610, %v646
    %v663 = vadd.f32 %v615, %v647
    %v664 = vadd.f32 %v618, %v648
    %v665 = vadd.f32 %v623, %v649
    %v666 = vadd.f32 %v626, %v650
    %v667 = vadd.f32 %v631, %v651
    %v668 = vadd.f32 %v634, %v652
    %669 = vst [vmem:[#allocation8] sm:$0xff] %v653
    %670 = vst [vmem:[#allocation8 + $0x8] sm:$0xff] %v654
    %671 = vst [vmem:[#allocation8 + $0x10] sm:$0xff] %v655
    %672 = vst [vmem:[#allocation8 + $0x18] sm:$0xff] %v656
    %673 = vst [vmem:[#allocation8 + $0x20] sm:$0xff] %v657
    %674 = vst [vmem:[#allocation8 + $0x28] sm:$0xff] %v658
    %675 = vst [vmem:[#allocation8 + $0x30] sm:$0xff] %v659
    %676 = vst [vmem:[#allocation8 + $0x38] sm:$0xff] %v660
    %677 = vst [vmem:[#allocation8 + $0x40] sm:$0xff] %v661
    %678 = vst [vmem:[#allocation8 + $0x48] sm:$0xff] %v662
    %679 = vst [vmem:[#allocation8 + $0x50] sm:$0xff] %v663
    %680 = vst [vmem:[#allocation8 + $0x58] sm:$0xff] %v664
    %681 = vst [vmem:[#allocation8 + $0x60] sm:$0xff] %v665
    %682 = vst [vmem:[#allocation8 + $0x68] sm:$0xff] %v666
    %683 = vst [vmem:[#allocation8 + $0x70] sm:$0xff] %v667
    %684 = vst [vmem:[#allocation8 + $0x78] sm:$0xff] %v668
    // Predicated region
    $region34: #{tpu_custom_call.1} parent=1 // pred_check
      _
    $region35: #{tpu_custom_call.1} parent=1 // pred_check_branch
      %686 = sbr.rel (0) target = $region37
    $region36: #{tpu_custom_call.1} parent=1 // pred_region
      %s688 = ssub.s32 2048, 2048
      %689 = vsyncadd [#allocation5], %s688
      %s690 = sshll.u32 [#allocation8], 4
      %s691 = int_to_ptr.vmem [resolvable:$true] %s690
      %696 = dma.vmem_to_hbm [thread:$0]  %s691, 2048, %s5, [#allocation5], 128, 128, 8
    $region37: #{tpu_custom_call.1} parent=1 // pred_fallthru
      _
    // Predicated region
    $region38: #{tpu_custom_call.1} parent=1 // pred_check
      _
    $region39: #{tpu_custom_call.1} parent=1 // pred_check_branch
      %698 = sbr.rel (0) target = $region41
    $region40: #{tpu_custom_call.1} parent=1 // pred_region
      %699 = dma.done [#allocation5], 2048
    $region41: #{tpu_custom_call.1} parent=1 // pred_fallthru
      _
    %700 = vsyncpa [#allocation4], 1
    %701 = vsyncpa [#allocation7], 1
    %702 = vsyncpa [#allocation5], 1

// kernel: tpu_custom_call.1
$region0: #{tpu_custom_call.1}
  #allocation0 [shape = 'u32[]', space=smem, size = 0x4, offset = 0x4, fixed_abs, tag = 'smem constant byte address 0x4 - core index']
  #allocation1 [shape = 'u32[144,128]{1,0:T(1,128)}', space=vmem, size = 0x12000, scoped, tag = 'internal scratch']
  #allocation2 [shape = 'bf16[128,128]{1,0:T(8,128)(2,1)}', space=vmem, size = 0x8000, scoped, tag = 'scratch operand']
  %s0 = inlined_call_operand.hbm [shape: f32[128,128], index: 0, kind: input, shape index: {}]
  %s1 = inlined_call_operand.vmem [shape: f32[1,128], index: 1, kind: input, shape index: {}]
  %s2 = inlined_call_operand.vmem [shape: f32[1,128], index: 2, kind: input, shape index: {}]
  %s3 = inlined_call_operand.hbm [shape: bf16[128,128], index: 3, kind: input, shape index: {}]
  %s4 = inlined_call_operand.vmem [shape: f32[1,128], index: 4, kind: input, shape index: {}]
  %s5 = inlined_call_operand.hbm [shape: f32[128,128], index: 5, kind: output, shape index: {}]
  %s6 = sld [smem:[#allocation0]]
  $region42: #{tpu_custom_call.1} parent=0
    _
  %s8 = ssub.s32 1, %s6
  %s9 = scalar_select 0, %s8, %s6
  $region1: #{tpu_custom_call.1} parent=0
    #allocation3 [shape = 'u8[65536]{0}', space=vmem, size = 0x10000, scoped, tag = 'input window, operand 0, single buffered']
    #allocation4 [shape = 's32[1]{0}', space=sflag, size = 0x4, scoped, tag = 'scoped memory for tpu_custom_call.1']
    #allocation5 [shape = 's32[1]{0}', space=sflag, size = 0x4, scoped, tag = 'scoped memory for tpu_custom_call.1']
    #allocation6 [shape = 'u8[32768]{0}', space=vmem, size = 0x8000, scoped, tag = 'input window, operand 3, single buffered']
    #allocation7 [shape = 's32[1]{0}', space=sflag, size = 0x4, scoped, tag = 'scoped memory for tpu_custom_call.1']
    #allocation8 [shape = 'u8[65536]{0}', space=vmem, size = 0x10000, scoped, tag = 'output window, operand 0, single buffered']
    %10 = vsyncpa [#allocation4], 0
    %11 = vsyncpa [#allocation7], 0
    %12 = vsyncpa [#allocation5], 0
    // Predicated region
    $region2: #{tpu_custom_call.1} parent=1 // pred_check
      _
    $region3: #{tpu_custom_call.1} parent=1 // pred_check_branch
      %14 = sbr.rel (0) target = $region5
    $region4: #{tpu_custom_call.1} parent=1 // pred_region
      %s16 = ssub.s32 2048, 2048
      %17 = vsyncadd [#allocation4], %s16
      %s18 = sshll.u32 [#allocation3], 4
      %s19 = int_to_ptr.vmem [resolvable:$true] %s18
      %24 = dma.hbm_to_vmem [thread:$0]  %s0, 2048, %s19, [#allocation4], 128, 128, 8
    $region5: #{tpu_custom_call.1} parent=1 // pred_fallthru
      _
    // Predicated region
    $region6: #{tpu_custom_call.1} parent=1 // pred_check
      _
    $region7: #{tpu_custom_call.1} parent=1 // pred_check_branch
      %26 = sbr.rel (0) target = $region9
    $region8: #{tpu_custom_call.1} parent=1 // pred_region
      _
    $region9: #{tpu_custom_call.1} parent=1 // pred_fallthru
      _
    // Predicated region
    $region10: #{tpu_custom_call.1} parent=1 // pred_check
      _
    $region11: #{tpu_custom_call.1} parent=1 // pred_check_branch
      %28 = sbr.rel (0) target = $region13
    $region12: #{tpu_custom_call.1} parent=1 // pred_region
      _
    $region13: #{tpu_custom_call.1} parent=1 // pred_fallthru
      _
    // Predicated region
    $region14: #{tpu_custom_call.1} parent=1 // pred_check
      _
    $region15: #{tpu_custom_call.1} parent=1 // pred_check_branch
      %30 = sbr.rel (0) target = $region17
    $region16: #{tpu_custom_call.1} parent=1 // pred_region
      %s32 = ssub.s32 1024, 1024
      %33 = vsyncadd [#allocation7], %s32
      %s34 = sshll.u32 [#allocation6], 4
      %s35 = int_to_ptr.vmem [resolvable:$true] %s34
      %40 = dma.hbm_to_vmem [thread:$0]  %s3, 1024, %s35, [#allocation7], 64, 64, 4
    $region17: #{tpu_custom_call.1} parent=1 // pred_fallthru
      _
    // Predicated region
    $region18: #{tpu_custom_call.1} parent=1 // pred_check
      _
    $region19: #{tpu_custom_call.1} parent=1 // pred_check_branch
      %42 = sbr.rel (0) target = $region21
    $region20: #{tpu_custom_call.1} parent=1 // pred_region
      _
    $region21: #{tpu_custom_call.1} parent=1 // pred_fallthru
      _
    // Predicated region
    $region22: #{tpu_custom_call.1} parent=1 // pred_check
      _
    $region23: #{tpu_custom_call.1} parent=1 // pred_check_branch
      %44 = sbr.rel (0) target = $region25
    $region24: #{tpu_custom_call.1} parent=1 // pred_region
      %45 = dma.done [#allocation4], 2048
    $region25: #{tpu_custom_call.1} parent=1 // pred_fallthru
      _
    // Predicated region
    $region26: #{tpu_custom_call.1} parent=1 // pred_check
      _
    $region27: #{tpu_custom_call.1} parent=1 // pred_check_branch
      %47 = sbr.rel (0) target = $region29
    $region28: #{tpu_custom_call.1} parent=1 // pred_region
      %48 = dma.done [#allocation7], 1024
    $region29: #{tpu_custom_call.1} parent=1 // pred_fallthru
      _
    %p50 = scmp.eq.s32.totalorder 0, 0
    // Predicated region
    $region30: #{tpu_custom_call.1} parent=1 // pred_check
      %p51 = pneg %p50
    $region31: #{tpu_custom_call.1} parent=1 // pred_check_branch
      %53 = sbr.rel (%p51) target = $region33
    $region32: #{tpu_custom_call.1} parent=1 // pred_region
      %v54 = vld [vmem:[#allocation3] sm:$0xff]
      %v55 = vld [vmem:[#allocation3 + $0x8] sm:$0xff]
      %v56 = vld [vmem:[#allocation3 + $0x10] sm:$0xff]
      %v57 = vld [vmem:[#allocation3 + $0x18] sm:$0xff]
      %v58 = vld [vmem:[#allocation3 + $0x20] sm:$0xff]
      %v59 = vld [vmem:[#allocation3 + $0x28] sm:$0xff]
      %v60 = vld [vmem:[#allocation3 + $0x30] sm:$0xff]
      %v61 = vld [vmem:[#allocation3 + $0x38] sm:$0xff]
      %v62 = vld [vmem:[#allocation3 + $0x40] sm:$0xff]
      %v63 = vld [vmem:[#allocation3 + $0x48] sm:$0xff]
      %v64 = vld [vmem:[#allocation3 + $0x50] sm:$0xff]
      %v65 = vld [vmem:[#allocation3 + $0x58] sm:$0xff]
      %v66 = vld [vmem:[#allocation3 + $0x60] sm:$0xff]
      %v67 = vld [vmem:[#allocation3 + $0x68] sm:$0xff]
      %v68 = vld [vmem:[#allocation3 + $0x70] sm:$0xff]
      %v69 = vld [vmem:[#allocation3 + $0x78] sm:$0xff]
      %70 = vadd.xlane.f32.xlu0 %v54
      %v71 = vpop.xlane.xlu0 %70
      %72 = vadd.xlane.f32.xlu0 %v55
      %v73 = vpop.xlane.xlu0 %72
      %74 = vadd.xlane.f32.xlu0 %v56
      %v75 = vpop.xlane.xlu0 %74
      %76 = vadd.xlane.f32.xlu0 %v57
      %v77 = vpop.xlane.xlu0 %76
      %78 = vadd.xlane.f32.xlu0 %v58
      %v79 = vpop.xlane.xlu0 %78
      %80 = vadd.xlane.f32.xlu0 %v59
      %v81 = vpop.xlane.xlu0 %80
      %82 = vadd.xlane.f32.xlu0 %v60
      %v83 = vpop.xlane.xlu0 %82
      %84 = vadd.xlane.f32.xlu0 %v61
      %v85 = vpop.xlane.xlu0 %84
      %86 = vadd.xlane.f32.xlu0 %v62
      %v87 = vpop.xlane.xlu0 %86
      %88 = vadd.xlane.f32.xlu0 %v63
      %v89 = vpop.xlane.xlu0 %88
      %90 = vadd.xlane.f32.xlu0 %v64
      %v91 = vpop.xlane.xlu0 %90
      %92 = vadd.xlane.f32.xlu0 %v65
      %v93 = vpop.xlane.xlu0 %92
      %94 = vadd.xlane.f32.xlu0 %v66
      %v95 = vpop.xlane.xlu0 %94
      %96 = vadd.xlane.f32.xlu0 %v67
      %v97 = vpop.xlane.xlu0 %96
      %98 = vadd.xlane.f32.xlu0 %v68
      %v99 = vpop.xlane.xlu0 %98
      %100 = vadd.xlane.f32.xlu0 %v69
      %v101 = vpop.xlane.xlu0 %100
      %v102 = vrcp.pop 128.0
      %v103 = vmul.f32 %v71, %v102
      %v104 = vmul.f32 %v73, %v102
      %v105 = vmul.f32 %v75, %v102
      %v106 = vmul.f32 %v77, %v102
      %v107 = vmul.f32 %v79, %v102
      %v108 = vmul.f32 %v81, %v102
      %v109 = vmul.f32 %v83, %v102
      %v110 = vmul.f32 %v85, %v102
      %v111 = vmul.f32 %v87, %v102
      %v112 = vmul.f32 %v89, %v102
      %v113 = vmul.f32 %v91, %v102
      %v114 = vmul.f32 %v93, %v102
      %v115 = vmul.f32 %v95, %v102
      %v116 = vmul.f32 %v97, %v102
      %v117 = vmul.f32 %v99, %v102
      %v118 = vmul.f32 %v101, %v102
      %v119 = vmul.f32 %v54, %v54
      %v120 = vmul.f32 %v55, %v55
      %v121 = vmul.f32 %v56, %v56
      %v122 = vmul.f32 %v57, %v57
      %v123 = vmul.f32 %v58, %v58
      %v124 = vmul.f32 %v59, %v59
      %v125 = vmul.f32 %v60, %v60
      %v126 = vmul.f32 %v61, %v61
      %v127 = vmul.f32 %v62, %v62
      %v128 = vmul.f32 %v63, %v63
      %v129 = vmul.f32 %v64, %v64
      %v130 = vmul.f32 %v65, %v65
      %v131 = vmul.f32 %v66, %v66
      %v132 = vmul.f32 %v67, %v67
      %v133 = vmul.f32 %v68, %v68
      %v134 = vmul.f32 %v69, %v69
      %135 = vadd.xlane.f32.xlu0 %v119
      %v136 = vpop.xlane.xlu0 %135
      %137 = vadd.xlane.f32.xlu0 %v120
      %v138 = vpop.xlane.xlu0 %137
      %139 = vadd.xlane.f32.xlu0 %v121
      %v140 = vpop.xlane.xlu0 %139
      %141 = vadd.xlane.f32.xlu0 %v122
      %v142 = vpop.xlane.xlu0 %141
      %143 = vadd.xlane.f32.xlu0 %v123
      %v144 = vpop.xlane.xlu0 %143
      %145 = vadd.xlane.f32.xlu0 %v124
      %v146 = vpop.xlane.xlu0 %145
      %147 = vadd.xlane.f32.xlu0 %v125
      %v148 = vpop.xlane.xlu0 %147
      %149 = vadd.xlane.f32.xlu0 %v126
      %v150 = vpop.xlane.xlu0 %149
      %151 = vadd.xlane.f32.xlu0 %v127
      %v152 = vpop.xlane.xlu0 %151
      %153 = vadd.xlane.f32.xlu0 %v128
      %v154 = vpop.xlane.xlu0 %153
      %155 = vadd.xlane.f32.xlu0 %v129
      %v156 = vpop.xlane.xlu0 %155
      %157 = vadd.xlane.f32.xlu0 %v130
      %v158 = vpop.xlane.xlu0 %157
      %159 = vadd.xlane.f32.xlu0 %v131
      %v160 = vpop.xlane.xlu0 %159
      %161 = vadd.xlane.f32.xlu0 %v132
      %v162 = vpop.xlane.xlu0 %161
      %163 = vadd.xlane.f32.xlu0 %v133
      %v164 = vpop.xlane.xlu0 %163
      %165 = vadd.xlane.f32.xlu0 %v134
      %v166 = vpop.xlane.xlu0 %165
      %v167 = vmul.f32 %v136, %v102
      %v168 = vmul.f32 %v138, %v102
      %v169 = vmul.f32 %v140, %v102
      %v170 = vmul.f32 %v142, %v102
      %v171 = vmul.f32 %v144, %v102
      %v172 = vmul.f32 %v146, %v102
      %v173 = vmul.f32 %v148, %v102
      %v174 = vmul.f32 %v150, %v102
      %v175 = vmul.f32 %v152, %v102
      %v176 = vmul.f32 %v154, %v102
      %v177 = vmul.f32 %v156, %v102
      %v178 = vmul.f32 %v158, %v102
      %v179 = vmul.f32 %v160, %v102
      %v180 = vmul.f32 %v162, %v102
      %v181 = vmul.f32 %v164, %v102
      %v182 = vmul.f32 %v166, %v102
      %v183 = vmul.f32 %v103, %v103
      %v184 = vmul.f32 %v104, %v104
      %v185 = vmul.f32 %v105, %v105
      %v186 = vmul.f32 %v106, %v106
      %v187 = vmul.f32 %v107, %v107
      %v188 = vmul.f32 %v108, %v108
      %v189 = vmul.f32 %v109, %v109
      %v190 = vmul.f32 %v110, %v110
      %v191 = vmul.f32 %v111, %v111
      %v192 = vmul.f32 %v112, %v112
      %v193 = vmul.f32 %v113, %v113
      %v194 = vmul.f32 %v114, %v114
      %v195 = vmul.f32 %v115, %v115
      %v196 = vmul.f32 %v116, %v116
      %v197 = vmul.f32 %v117, %v117
      %v198 = vmul.f32 %v118, %v118
      %v199 = vsub.f32 %v167, %v183
      %v200 = vsub.f32 %v168, %v184
      %v201 = vsub.f32 %v169, %v185
      %v202 = vsub.f32 %v170, %v186
      %v203 = vsub.f32 %v171, %v187
      %v204 = vsub.f32 %v172, %v188
      %v205 = vsub.f32 %v173, %v189
      %v206 = vsub.f32 %v174, %v190
      %v207 = vsub.f32 %v175, %v191
      %v208 = vsub.f32 %v176, %v192
      %v209 = vsub.f32 %v177, %v193
      %v210 = vsub.f32 %v178, %v194
      %v211 = vsub.f32 %v179, %v195
      %v212 = vsub.f32 %v180, %v196
      %v213 = vsub.f32 %v181, %v197
      %v214 = vsub.f32 %v182, %v198
      %v215 = vadd.f32 %v199, 1e-05
      %v216 = vadd.f32 %v200, 1e-05
      %v217 = vadd.f32 %v201, 1e-05
      %v218 = vadd.f32 %v202, 1e-05
      %v219 = vadd.f32 %v203, 1e-05
      %v220 = vadd.f32 %v204, 1e-05
      %v221 = vadd.f32 %v205, 1e-05
      %v222 = vadd.f32 %v206, 1e-05
      %v223 = vadd.f32 %v207, 1e-05
      %v224 = vadd.f32 %v208, 1e-05
      %v225 = vadd.f32 %v209, 1e-05
      %v226 = vadd.f32 %v210, 1e-05
      %v227 = vadd.f32 %v211, 1e-05
      %v228 = vadd.f32 %v212, 1e-05
      %v229 = vadd.f32 %v213, 1e-05
      %v230 = vadd.f32 %v214, 1e-05
      %v231 = vrsqrt.pop %v215
      %v232 = vrsqrt.pop %v216
      %v233 = vrsqrt.pop %v217
      %v234 = vrsqrt.pop %v218
      %v235 = vrsqrt.pop %v219
      %v236 = vrsqrt.pop %v220
      %v237 = vrsqrt.pop %v221
      %v238 = vrsqrt.pop %v222
      %v239 = vrsqrt.pop %v223
      %v240 = vrsqrt.pop %v224
      %v241 = vrsqrt.pop %v225
      %v242 = vrsqrt.pop %v226
      %v243 = vrsqrt.pop %v227
      %v244 = vrsqrt.pop %v228
      %v245 = vrsqrt.pop %v229
      %v246 = vrsqrt.pop %v230
      %v247 = vsub.f32 %v54, %v103
      %v248 = vsub.f32 %v55, %v104
      %v249 = vsub.f32 %v56, %v105
      %v250 = vsub.f32 %v57, %v106
      %v251 = vsub.f32 %v58, %v107
      %v252 = vsub.f32 %v59, %v108
      %v253 = vsub.f32 %v60, %v109
      %v254 = vsub.f32 %v61, %v110
      %v255 = vsub.f32 %v62, %v111
      %v256 = vsub.f32 %v63, %v112
      %v257 = vsub.f32 %v64, %v113
      %v258 = vsub.f32 %v65, %v114
      %v259 = vsub.f32 %v66, %v115
      %v260 = vsub.f32 %v67, %v116
      %v261 = vsub.f32 %v68, %v117
      %v262 = vsub.f32 %v69, %v118
      %v263 = vld [vmem:[%s1] sm:$0x1]
      %v265 = vlaneseq
      %v266 = vshrl.u32 %v265, 7
      %v267 = vsub.s32 0, %v266
      %v268 = vrot.slane %v263, %v267
      %v270 = vmul.f32 %v231, %v268
      %v271 = vmul.f32 %v232, %v268
      %v272 = vmul.f32 %v233, %v268
      %v273 = vmul.f32 %v234, %v268
      %v274 = vmul.f32 %v235, %v268
      %v275 = vmul.f32 %v236, %v268
      %v276 = vmul.f32 %v237, %v268
      %v277 = vmul.f32 %v238, %v268
      %v278 = vmul.f32 %v239, %v268
      %v279 = vmul.f32 %v240, %v268
      %v280 = vmul.f32 %v241, %v268
      %v281 = vmul.f32 %v242, %v268
      %v282 = vmul.f32 %v243, %v268
      %v283 = vmul.f32 %v244, %v268
      %v284 = vmul.f32 %v245, %v268
      %v285 = vmul.f32 %v246, %v268
      %v286 = vmul.f32 %v247, %v270
      %v287 = vmul.f32 %v248, %v271
      %v288 = vmul.f32 %v249, %v272
      %v289 = vmul.f32 %v250, %v273
      %v290 = vmul.f32 %v251, %v274
      %v291 = vmul.f32 %v252, %v275
      %v292 = vmul.f32 %v253, %v276
      %v293 = vmul.f32 %v254, %v277
      %v294 = vmul.f32 %v255, %v278
      %v295 = vmul.f32 %v256, %v279
      %v296 = vmul.f32 %v257, %v280
      %v297 = vmul.f32 %v258, %v281
      %v298 = vmul.f32 %v259, %v282
      %v299 = vmul.f32 %v260, %v283
      %v300 = vmul.f32 %v261, %v284
      %v301 = vmul.f32 %v262, %v285
      %v302 = vld [vmem:[%s2] sm:$0x1]
      %v304 = vlaneseq
      %v305 = vshrl.u32 %v304, 7
      %v306 = vsub.s32 0, %v305
      %v307 = vrot.slane %v302, %v306
      %v309 = vadd.f32 %v286, %v307
      %v310 = vadd.f32 %v287, %v307
      %v311 = vadd.f32 %v288, %v307
      %v312 = vadd.f32 %v289, %v307
      %v313 = vadd.f32 %v290, %v307
      %v314 = vadd.f32 %v291, %v307
      %v315 = vadd.f32 %v292, %v307
      %v316 = vadd.f32 %v293, %v307
      %v317 = vadd.f32 %v294, %v307
      %v318 = vadd.f32 %v295, %v307
      %v319 = vadd.f32 %v296, %v307
      %v320 = vadd.f32 %v297, %v307
      %v321 = vadd.f32 %v298, %v307
      %v322 = vadd.f32 %v299, %v307
      %v323 = vadd.f32 %v300, %v307
      %v324 = vadd.f32 %v301, %v307
      %v325 = vpack.c.bf16 %v310, %v309
      %v326 = vpack.c.bf16 %v312, %v311
      %v327 = vpack.c.bf16 %v314, %v313
      %v328 = vpack.c.bf16 %v316, %v315
      %v329 = vpack.c.bf16 %v318, %v317
      %v330 = vpack.c.bf16 %v320, %v319
      %v331 = vpack.c.bf16 %v322, %v321
      %v332 = vpack.c.bf16 %v324, %v323
      %v341 = vunpack.c.l.b16 %v325
      %v342 = vunpack.c.h.b16 %v325
      %v343 = vunpack.c.l.b16 %v326
      %v344 = vunpack.c.h.b16 %v326
      %v345 = vunpack.c.l.b16 %v327
      %v346 = vunpack.c.h.b16 %v327
      %v347 = vunpack.c.l.b16 %v328
      %v348 = vunpack.c.h.b16 %v328
      %v349 = vunpack.c.l.b16 %v329
      %v350 = vunpack.c.h.b16 %v329
      %v351 = vunpack.c.l.b16 %v330
      %v352 = vunpack.c.h.b16 %v330
      %v353 = vunpack.c.l.b16 %v331
      %v354 = vunpack.c.h.b16 %v331
      %v355 = vunpack.c.l.b16 %v332
      %v356 = vunpack.c.h.b16 %v332
      %v357 = vpack.c.b16 %v341, %v341
      %v358 = vpack.c.b16 %v342, %v342
      %v359 = vpack.c.b16 %v343, %v343
      %v360 = vpack.c.b16 %v344, %v344
      %v361 = vpack.c.b16 %v345, %v345
      %v362 = vpack.c.b16 %v346, %v346
      %v363 = vpack.c.b16 %v347, %v347
      %v364 = vpack.c.b16 %v348, %v348
      %v365 = vpack.c.b16 %v349, %v349
      %v366 = vpack.c.b16 %v350, %v350
      %v367 = vpack.c.b16 %v351, %v351
      %v368 = vpack.c.b16 %v352, %v352
      %v369 = vpack.c.b16 %v353, %v353
      %v370 = vpack.c.b16 %v354, %v354
      %v371 = vpack.c.b16 %v355, %v355
      %v372 = vpack.c.b16 %v356, %v356
      %389 = vst [vmem:[#allocation2] sm:$0xf] %v357
      %390 = vst [vmem:[#allocation2 + $0x4] sm:$0xf] %v358
      %391 = vst [vmem:[#allocation2 + $0x8] sm:$0xf] %v359
      %392 = vst [vmem:[#allocation2 + $0xc] sm:$0xf] %v360
      %393 = vst [vmem:[#allocation2 + $0x10] sm:$0xf] %v361
      %394 = vst [vmem:[#allocation2 + $0x14] sm:$0xf] %v362
      %395 = vst [vmem:[#allocation2 + $0x18] sm:$0xf] %v363
      %396 = vst [vmem:[#allocation2 + $0x1c] sm:$0xf] %v364
      %397 = vst [vmem:[#allocation2 + $0x20] sm:$0xf] %v365
      %398 = vst [vmem:[#allocation2 + $0x24] sm:$0xf] %v366
      %399 = vst [vmem:[#allocation2 + $0x28] sm:$0xf] %v367
      %400 = vst [vmem:[#allocation2 + $0x2c] sm:$0xf] %v368
      %401 = vst [vmem:[#allocation2 + $0x30] sm:$0xf] %v369
      %402 = vst [vmem:[#allocation2 + $0x34] sm:$0xf] %v370
      %403 = vst [vmem:[#allocation2 + $0x38] sm:$0xf] %v371
      %404 = vst [vmem:[#allocation2 + $0x3c] sm:$0xf] %v372
    $region33: #{tpu_custom_call.1} parent=1 // pred_fallthru
      _
    %v405 = vld [vmem:[#allocation2] sm:$0xf]
    %v406 = vld [vmem:[#allocation2 + $0x4] sm:$0xf]
    %v407 = vld [vmem:[#allocation2 + $0x8] sm:$0xf]
    %v408 = vld [vmem:[#allocation2 + $0xc] sm:$0xf]
    %v409 = vld [vmem:[#allocation2 + $0x10] sm:$0xf]
    %v410 = vld [vmem:[#allocation2 + $0x14] sm:$0xf]
    %v411 = vld [vmem:[#allocation2 + $0x18] sm:$0xf]
    %v412 = vld [vmem:[#allocation2 + $0x1c] sm:$0xf]
    %v413 = vld [vmem:[#allocation2 + $0x20] sm:$0xf]
    %v414 = vld [vmem:[#allocation2 + $0x24] sm:$0xf]
    %v415 = vld [vmem:[#allocation2 + $0x28] sm:$0xf]
    %v416 = vld [vmem:[#allocation2 + $0x2c] sm:$0xf]
    %v417 = vld [vmem:[#allocation2 + $0x30] sm:$0xf]
    %v418 = vld [vmem:[#allocation2 + $0x34] sm:$0xf]
    %v419 = vld [vmem:[#allocation2 + $0x38] sm:$0xf]
    %v420 = vld [vmem:[#allocation2 + $0x3c] sm:$0xf]
    %v421 = vld [vmem:[#allocation6] sm:$0xf]
    %v422 = vld [vmem:[#allocation6 + $0x4] sm:$0xf]
    %v423 = vld [vmem:[#allocation6 + $0x8] sm:$0xf]
    %v424 = vld [vmem:[#allocation6 + $0xc] sm:$0xf]
    %v425 = vld [vmem:[#allocation6 + $0x10] sm:$0xf]
    %v426 = vld [vmem:[#allocation6 + $0x14] sm:$0xf]
    %v427 = vld [vmem:[#allocation6 + $0x18] sm:$0xf]
    %v428 = vld [vmem:[#allocation6 + $0x1c] sm:$0xf]
    %v429 = vld [vmem:[#allocation6 + $0x20] sm:$0xf]
    %v430 = vld [vmem:[#allocation6 + $0x24] sm:$0xf]
    %v431 = vld [vmem:[#allocation6 + $0x28] sm:$0xf]
    %v432 = vld [vmem:[#allocation6 + $0x2c] sm:$0xf]
    %v433 = vld [vmem:[#allocation6 + $0x30] sm:$0xf]
    %v434 = vld [vmem:[#allocation6 + $0x34] sm:$0xf]
    %v435 = vld [vmem:[#allocation6 + $0x38] sm:$0xf]
    %v436 = vld [vmem:[#allocation6 + $0x3c] sm:$0xf]
    %v437 = vld [vmem:[%s4] sm:$0x1]
    %v439 = vlaneseq
    %v440 = vshrl.u32 %v439, 7
    %v441 = vsub.s32 0, %v440
    %v442 = vrot.slane %v437, %v441
    %v460 = vunpack.c.l.b16 %v405
    %v461 = vunpack.c.l.b16 %v406
    %v462 = vunpack.c.l.b16 %v407
    %v463 = vunpack.c.l.b16 %v408
    %v464 = vunpack.c.l.b16 %v409
    %v465 = vunpack.c.l.b16 %v410
    %v466 = vunpack.c.l.b16 %v411
    %v467 = vunpack.c.l.b16 %v412
    %v468 = vunpack.c.l.b16 %v413
    %v469 = vunpack.c.l.b16 %v414
    %v470 = vunpack.c.l.b16 %v415
    %v471 = vunpack.c.l.b16 %v416
    %v472 = vunpack.c.l.b16 %v417
    %v473 = vunpack.c.l.b16 %v418
    %v474 = vunpack.c.l.b16 %v419
    %v475 = vunpack.c.l.b16 %v420
    %v476 = vpack.c.b16 %v461, %v460
    %v477 = vpack.c.b16 %v463, %v462
    %v478 = vpack.c.b16 %v465, %v464
    %v479 = vpack.c.b16 %v467, %v466
    %v480 = vpack.c.b16 %v469, %v468
    %v481 = vpack.c.b16 %v471, %v470
    %v482 = vpack.c.b16 %v473, %v472
    %v483 = vpack.c.b16 %v475, %v474
    %v508 = vunpack.c.l.b16 %v421
    %v509 = vunpack.c.l.b16 %v422
    %v510 = vunpack.c.l.b16 %v423
    %v511 = vunpack.c.l.b16 %v424
    %v512 = vunpack.c.l.b16 %v425
    %v513 = vunpack.c.l.b16 %v426
    %v514 = vunpack.c.l.b16 %v427
    %v515 = vunpack.c.l.b16 %v428
    %v516 = vunpack.c.l.b16 %v429
    %v517 = vunpack.c.l.b16 %v430
    %v518 = vunpack.c.l.b16 %v431
    %v519 = vunpack.c.l.b16 %v432
    %v520 = vunpack.c.l.b16 %v433
    %v521 = vunpack.c.l.b16 %v434
    %v522 = vunpack.c.l.b16 %v435
    %v523 = vunpack.c.l.b16 %v436
    %v524 = vpack.c.b16 %v509, %v508
    %v525 = vpack.c.b16 %v511, %v510
    %v526 = vpack.c.b16 %v513, %v512
    %v527 = vpack.c.b16 %v515, %v514
    %v528 = vpack.c.b16 %v517, %v516
    %v529 = vpack.c.b16 %v519, %v518
    %v530 = vpack.c.b16 %v521, %v520
    %v531 = vpack.c.b16 %v523, %v522
    %540 = vmatprep.subr.bf16.mxu0 0
    %541 = vmatpush1.bf16.msra.mxu0 %v531
    %542 = vmatprep.subr.bf16.mxu0 0
    %543 = vmatpush1.bf16.msra.mxu0 %v530
    %544 = vmatprep.subr.bf16.mxu0 0
    %545 = vmatpush1.bf16.msra.mxu0 %v529
    %546 = vmatprep.subr.bf16.mxu0 0
    %547 = vmatpush1.bf16.msra.mxu0 %v528
    %548 = vmatprep.subr.bf16.mxu0 0
    %549 = vmatpush1.bf16.msra.mxu0 %v527
    %550 = vmatprep.subr.bf16.mxu0 0
    %551 = vmatpush1.bf16.msra.mxu0 %v526
    %552 = vmatprep.subr.bf16.mxu0 0
    %553 = vmatpush1.bf16.msra.mxu0 %v525
    %554 = vmatprep.subr.bf16.mxu0 0
    %555 = vmatpush1.bf16.msra.mxu0 %v524
    %556 = vmatprep.subr.bf16.mxu0 0
    %557 = vmatpush2.bf16.msra.mxu0 0
    %558 = vmatprep.subr.bf16.mxu0 0
    %559 = vmatpush2.bf16.msra.mxu0 0
    %560 = vmatprep.subr.bf16.mxu0 0
    %561 = vmatpush2.bf16.msra.mxu0 0
    %562 = vmatprep.subr.bf16.mxu0 0
    %563 = vmatpush2.bf16.msra.mxu0 0
    %564 = vmatprep.subr.bf16.mxu0 0
    %565 = vmatpush2.bf16.msra.mxu0 0
    %566 = vmatprep.subr.bf16.mxu0 0
    %567 = vmatpush2.bf16.msra.mxu0 0
    %568 = vmatprep.subr.bf16.mxu0 0
    %569 = vmatpush2.bf16.msra.mxu0 0
    %570 = vmatprep.subr.bf16.mxu0 0
    %571 = vmatpush2.bf16.msra.mxu0 0
    %572 = vmatprep.mubr.bf16.mxu0 0
    %573 = vmatmul.mubr.bf16.gmra.mxu0 %v476
    %v574 = vpop.f32.mrf.mxu0
    %v575 = vadd.f32 %v442, %v574
    %v576 = vpop.f32.mrf.mxu0
    %v577 = vpop.f32.mrf.mxu0
    %v578 = vadd.f32 %v442, %v577
    %v579 = vpop.f32.mrf.mxu0
    %580 = vmatprep.mubr.bf16.mxu0 0
    %581 = vmatmul.mubr.bf16.gmra.mxu0 %v477
    %v582 = vpop.f32.mrf.mxu0
    %v583 = vadd.f32 %v442, %v582
    %v584 = vpop.f32.mrf.mxu0
    %v585 = vpop.f32.mrf.mxu0
    %v586 = vadd.f32 %v442, %v585
    %v587 = vpop.f32.mrf.mxu0
    %588 = vmatprep.mubr.bf16.mxu0 0
    %589 = vmatmul.mubr.bf16.gmra.mxu0 %v478
    %v590 = vpop.f32.mrf.mxu0
    %v591 = vadd.f32 %v442, %v590
    %v592 = vpop.f32.mrf.mxu0
    %v593 = vpop.f32.mrf.mxu0
    %v594 = vadd.f32 %v442, %v593
    %v595 = vpop.f32.mrf.mxu0
    %596 = vmatprep.mubr.bf16.mxu0 0
    %597 = vmatmul.mubr.bf16.gmra.mxu0 %v479
    %v598 = vpop.f32.mrf.mxu0
    %v599 = vadd.f32 %v442, %v598
    %v600 = vpop.f32.mrf.mxu0
    %v601 = vpop.f32.mrf.mxu0
    %v602 = vadd.f32 %v442, %v601
    %v603 = vpop.f32.mrf.mxu0
    %604 = vmatprep.mubr.bf16.mxu0 0
    %605 = vmatmul.mubr.bf16.gmra.mxu0 %v480
    %v606 = vpop.f32.mrf.mxu0
    %v607 = vadd.f32 %v442, %v606
    %v608 = vpop.f32.mrf.mxu0
    %v609 = vpop.f32.mrf.mxu0
    %v610 = vadd.f32 %v442, %v609
    %v611 = vpop.f32.mrf.mxu0
    %612 = vmatprep.mubr.bf16.mxu0 0
    %613 = vmatmul.mubr.bf16.gmra.mxu0 %v481
    %v614 = vpop.f32.mrf.mxu0
    %v615 = vadd.f32 %v442, %v614
    %v616 = vpop.f32.mrf.mxu0
    %v617 = vpop.f32.mrf.mxu0
    %v618 = vadd.f32 %v442, %v617
    %v619 = vpop.f32.mrf.mxu0
    %620 = vmatprep.mubr.bf16.mxu0 0
    %621 = vmatmul.mubr.bf16.gmra.mxu0 %v482
    %v622 = vpop.f32.mrf.mxu0
    %v623 = vadd.f32 %v442, %v622
    %v624 = vpop.f32.mrf.mxu0
    %v625 = vpop.f32.mrf.mxu0
    %v626 = vadd.f32 %v442, %v625
    %v627 = vpop.f32.mrf.mxu0
    %628 = vmatprep.mubr.bf16.mxu0 0
    %629 = vmatmul.mubr.bf16.gmra.mxu0 %v483
    %v630 = vpop.f32.mrf.mxu0
    %v631 = vadd.f32 %v442, %v630
    %v632 = vpop.f32.mrf.mxu0
    %v633 = vpop.f32.mrf.mxu0
    %v634 = vadd.f32 %v442, %v633
    %v635 = vpop.f32.mrf.mxu0
    %636 = vdwg.mxu0
    %v637 = vld [vmem:[#allocation3] sm:$0xff]
    %v638 = vld [vmem:[#allocation3 + $0x8] sm:$0xff]
    %v639 = vld [vmem:[#allocation3 + $0x10] sm:$0xff]
    %v640 = vld [vmem:[#allocation3 + $0x18] sm:$0xff]
    %v641 = vld [vmem:[#allocation3 + $0x20] sm:$0xff]
    %v642 = vld [vmem:[#allocation3 + $0x28] sm:$0xff]
    %v643 = vld [vmem:[#allocation3 + $0x30] sm:$0xff]
    %v644 = vld [vmem:[#allocation3 + $0x38] sm:$0xff]
    %v645 = vld [vmem:[#allocation3 + $0x40] sm:$0xff]
    %v646 = vld [vmem:[#allocation3 + $0x48] sm:$0xff]
    %v647 = vld [vmem:[#allocation3 + $0x50] sm:$0xff]
    %v648 = vld [vmem:[#allocation3 + $0x58] sm:$0xff]
    %v649 = vld [vmem:[#allocation3 + $0x60] sm:$0xff]
    %v650 = vld [vmem:[#allocation3 + $0x68] sm:$0xff]
    %v651 = vld [vmem:[#allocation3 + $0x70] sm:$0xff]
    %v652 = vld [vmem:[#allocation3 + $0x78] sm:$0xff]
    %v653 = vadd.f32 %v575, %v637
    %v654 = vadd.f32 %v578, %v638
    %v655 = vadd.f32 %v583, %v639
    %v656 = vadd.f32 %v586, %v640
    %v657 = vadd.f32 %v591, %v641
    %v658 = vadd.f32 %v594, %v642
    %v659 = vadd.f32 %v599, %v643
    %v660 = vadd.f32 %v602, %v644
    %v661 = vadd.f32 %v607, %v645
    %v662 = vadd.f32 %v610, %v646
    %v663 = vadd.f32 %v615, %v647
    %v664 = vadd.f32 %v618, %v648
    %v665 = vadd.f32 %v623, %v649
    %v666 = vadd.f32 %v626, %v650
    %v667 = vadd.f32 %v631, %v651
    %v668 = vadd.f32 %v634, %v652
    %669 = vst [vmem:[#allocation8] sm:$0xff] %v653
    %670 = vst [vmem:[#allocation8 + $0x8] sm:$0xff] %v654
    %671 = vst [vmem:[#allocation8 + $0x10] sm:$0xff] %v655
    %672 = vst [vmem:[#allocation8 + $0x18] sm:$0xff] %v656
    %673 = vst [vmem:[#allocation8 + $0x20] sm:$0xff] %v657
    %674 = vst [vmem:[#allocation8 + $0x28] sm:$0xff] %v658
    %675 = vst [vmem:[#allocation8 + $0x30] sm:$0xff] %v659
    %676 = vst [vmem:[#allocation8 + $0x38] sm:$0xff] %v660
    %677 = vst [vmem:[#allocation8 + $0x40] sm:$0xff] %v661
    %678 = vst [vmem:[#allocation8 + $0x48] sm:$0xff] %v662
    %679 = vst [vmem:[#allocation8 + $0x50] sm:$0xff] %v663
    %680 = vst [vmem:[#allocation8 + $0x58] sm:$0xff] %v664
    %681 = vst [vmem:[#allocation8 + $0x60] sm:$0xff] %v665
    %682 = vst [vmem:[#allocation8 + $0x68] sm:$0xff] %v666
    %683 = vst [vmem:[#allocation8 + $0x70] sm:$0xff] %v667
    %684 = vst [vmem:[#allocation8 + $0x78] sm:$0xff] %v668
    // Predicated region
    $region34: #{tpu_custom_call.1} parent=1 // pred_check
      _
    $region35: #{tpu_custom_call.1} parent=1 // pred_check_branch
      %686 = sbr.rel (0) target = $region37
    $region36: #{tpu_custom_call.1} parent=1 // pred_region
      %s688 = ssub.s32 2048, 2048
      %689 = vsyncadd [#allocation5], %s688
      %s690 = sshll.u32 [#allocation8], 4
      %s691 = int_to_ptr.vmem [resolvable:$true] %s690
      %696 = dma.vmem_to_hbm [thread:$0]  %s691, 2048, %s5, [#allocation5], 128, 128, 8
    $region37: #{tpu_custom_call.1} parent=1 // pred_fallthru
      _
    // Predicated region
    $region38: #{tpu_custom_call.1} parent=1 // pred_check
      _
    $region39: #{tpu_custom_call.1} parent=1 // pred_check_branch
      %698 = sbr.rel (0) target = $region41
    $region40: #{tpu_custom_call.1} parent=1 // pred_region
      %699 = dma.done [#allocation5], 2048
    $region41: #{tpu_custom_call.1} parent=1 // pred_fallthru
      _
    %700 = vsyncpa [#allocation4], 1
    %701 = vsyncpa [#allocation7], 1
    %702 = vsyncpa [#allocation5], 1

</llo_original>
